<compile_context>
chip_gen: v7x
topology: tpu7x:2x2x1
jax: 0.10.0
libtpu: 0.0.40
codegen_flags: <defaults>
</compile_context>

<pallas_src>
import functools

import jax
import jax.numpy as jnp
from jax.experimental import pallas as pl
from jax.experimental.pallas import tpu as pltpu

BN_EPS = 1e-5
LANE = 128


def _layer_block(x, wl, wc, wr, g, be, *, seg_len):
    """Conv1d(k=3, pad=1) -> BatchNorm1d(training) -> ReLU -> MaxPool1d(2).

    x:        (N, Cp)  activations; rows = (batch, position) flattened, lanes = channels.
    wl/wc/wr: (Cp, Cp) per-tap conv weights (taps l-1 / l / l+1), zero on padded channels.
    g, be:    (1, Cp)  BN affine params (zero on padded channels).
    seg_len:  static length of one batch segment along the row axis.
    Returns (N//2, Cp).
    """
    n, cp = x.shape

    # --- Conv taps via XLU sublane rolls + segment-boundary masks (no O(N^2) matmuls) ---
    pos = jax.lax.broadcasted_iota(jnp.int32, (n, 1), 0) % seg_len
    prev = jnp.where(pos == 0, 0.0, pltpu.roll(x, 1, axis=0))               # x[l-1], 0 at l==0
    nxt = jnp.where(pos == seg_len - 1, 0.0, pltpu.roll(x, n - 1, axis=0))  # x[l+1], 0 at l==L-1

    # --- Conv1d: three accumulated K=Cp MXU dots (im2col operand never materialized) ----
    y = jnp.dot(x, wc, preferred_element_type=jnp.float32)
    y = y + jnp.dot(prev, wl, preferred_element_type=jnp.float32)
    y = y + jnp.dot(nxt, wr, preferred_element_type=jnp.float32)
    # Conv bias intentionally omitted: BN's batch-mean subtraction cancels it exactly.

    # --- BatchNorm1d (training mode): biased batch stats over the N = B*L rows ----------
    inv_n = 1.0 / n
    mean = jnp.sum(y, axis=0, keepdims=True) * inv_n
    var = jnp.maximum(jnp.sum(y * y, axis=0, keepdims=True) * inv_n - mean * mean, 0.0)
    y = (y - mean) * (g * jax.lax.rsqrt(var + BN_EPS)) + be

    # --- ReLU ----------------------------------------------------------------------------
    y = jnp.maximum(y, 0.0)

    # --- MaxPool1d(2): pair adjacent rows on the lane axis, one elementwise max ----------
    y2 = y.reshape(n // 2, 2 * cp)
    return jnp.maximum(y2[:, :cp], y2[:, cp:])


def classifier1d_kernel(x_ref, wl1_ref, wc1_ref, wr1_ref, g1_ref, be1_ref,
                        wl2_ref, wc2_ref, wr2_ref, g2_ref, be2_ref,
                        fcw_ref, fcb_ref, out_ref, *, seq_len):
    h = _layer_block(x_ref[...], wl1_ref[...], wc1_ref[...], wr1_ref[...],
                     g1_ref[...], be1_ref[...], seg_len=seq_len)
    h = _layer_block(h, wl2_ref[...], wc2_ref[...], wr2_ref[...],
                     g2_ref[...], be2_ref[...], seg_len=seq_len // 2)
    nf, cp = h.shape
    b = out_ref.shape[0]
    # fcw was pre-permuted (and channel/out padded) so this (l, c)-major collapse reproduces
    # PyTorch's (c, l)-major view(); the 6 KiB relayout is negligible at this size.
    flat = h.reshape(b, (nf // b) * cp)
    out = jnp.dot(flat, fcw_ref[...], preferred_element_type=jnp.float32) + fcb_ref[...]
    out_ref[...] = out.astype(out_ref.dtype)   # lane-dense (out padded to 128) store


def prepare_params(params, input_size, out_size):
    """One-time padding / permutation of the PyTorch-layout parameters (constants)."""
    C = input_size
    cp = ((C + LANE - 1) // LANE) * LANE          # channels padded lane-dense
    outp = ((out_size + LANE - 1) // LANE) * LANE  # FC outputs padded lane-dense
    lf = params["fc_w"].shape[1] // C              # spatial length after the two pools (6)

    def tap(w, t):  # (Cout, Cin, 3) tap t -> (Cp, Cp) with (Cin rows, Cout cols)
        return jnp.zeros((cp, cp), jnp.float32).at[:C, :C].set(jnp.transpose(w[:, :, t]))

    def vec(v):     # (C,) -> (1, Cp), zero on padded channels
        return jnp.zeros((1, cp), jnp.float32).at[0, :C].set(v)

    # fc_w: (out, C*lf) in PyTorch (c, l)-major flatten -> (lf*Cp, out_p) in (l, c)-major.
    fc3 = params["fc_w"].reshape(out_size, C, lf)
    fcw = (jnp.zeros((lf, cp, outp), jnp.float32)
           .at[:, :C, :out_size].set(jnp.transpose(fc3, (2, 1, 0)))
           .reshape(lf * cp, outp))
    fcb = jnp.zeros((1, outp), jnp.float32).at[0, :out_size].set(params["fc_b"])

    # Conv biases b1/b2 are deliberately not used: they cancel under training-mode BN.
    return {
        "wl1": tap(params["w1"], 0), "wc1": tap(params["w1"], 1), "wr1": tap(params["w1"], 2),
        "g1": vec(params["g1"]), "be1": vec(params["be1"]),
        "wl2": tap(params["w2"], 0), "wc2": tap(params["w2"], 1), "wr2": tap(params["w2"], 2),
        "g2": vec(params["g2"]), "be2": vec(params["be2"]),
        "fcw": fcw, "fcb": fcb,
    }


@functools.partial(jax.jit, static_argnames=("out_size",))
def classifier1d_forward(x_ncl, prepped, *, out_size):
    """x_ncl: (B, C, L) float32 (PyTorch NCL). Returns (B, out_size) float32."""
    B, C, L = x_ncl.shape
    assert L % 4 == 0, "two MaxPool1d(2) stages require L divisible by 4"
    cp = prepped["wc1"].shape[0]
    outp = prepped["fcb"].shape[1]

    # Input relayout: rows = (b, l), lanes = zero-padded channels (fused under jit).
    x = jnp.zeros((B, L, cp), jnp.float32).at[:, :, :C].set(jnp.transpose(x_ncl, (0, 2, 1)))
    x = x.reshape(B * L, cp)

    args = (x,
            prepped["wl1"], prepped["wc1"], prepped["wr1"], prepped["g1"], prepped["be1"],
            prepped["wl2"], prepped["wc2"], prepped["wr2"], prepped["g2"], prepped["be2"],
            prepped["fcw"], prepped["fcb"])

    vmem = pl.BlockSpec(memory_space=pltpu.MemorySpace.VMEM)
    out = pl.pallas_call(
        functools.partial(classifier1d_kernel, seq_len=L),
        out_shape=jax.ShapeDtypeStruct((B, outp), jnp.float32),
        in_specs=[vmem] * len(args),
        out_specs=vmem,
        # Whole working set is ~1 MiB; default scoped-VMEM limit is ample on v5e/v6e/v7x.
    )(*args)
    return out[:, :out_size]


def ref_forward(x, params):
    """Pure-JAX reference (NCL layout, mirrors PyTorch training-mode semantics)."""
    def block(x, w, b, g, be):
        y = jax.lax.conv_general_dilated(
            x, w, window_strides=(1,), padding=((1, 1),),
            dimension_numbers=("NCH", "OIH", "NCH"))
        y = y + b[None, :, None]
        mean = jnp.mean(y, axis=(0, 2), keepdims=True)
        var = jnp.mean(jnp.square(y - mean), axis=(0, 2), keepdims=True)
        y = (y - mean) / jnp.sqrt(var + BN_EPS) * g[None, :, None] + be[None, :, None]
        y = jnp.maximum(y, 0.0)
        B, C, L = y.shape
        return jnp.max(y.reshape(B, C, L // 2, 2), axis=-1)

    y = block(x, params["w1"], params["b1"], params["g1"], params["be1"])
    y = block(y, params["w2"], params["b2"], params["g2"], params["be2"])
    flat = y.reshape(y.shape[0], -1)
    return flat @ params["fc_w"].T + params["fc_b"]


def init_params(key, input_size, out_size):
    ks = jax.random.split(key, 6)
    c = input_size
    bc = 1.0 / (c * 3) ** 0.5
    bf = 1.0 / (c * 6) ** 0.5
    return {
        "w1": jax.random.uniform(ks[0], (c, c, 3), jnp.float32, -bc, bc),
        "b1": jax.random.uniform(ks[1], (c,), jnp.float32, -bc, bc),
        "g1": jnp.ones((c,), jnp.float32),
        "be1": jnp.zeros((c,), jnp.float32),
        "w2": jax.random.uniform(ks[2], (c, c, 3), jnp.float32, -bc, bc),
        "b2": jax.random.uniform(ks[3], (c,), jnp.float32, -bc, bc),
        "g2": jnp.ones((c,), jnp.float32),
        "be2": jnp.zeros((c,), jnp.float32),
        "fc_w": jax.random.uniform(ks[4], (out_size, c * 6), jnp.float32, -bf, bf),
        "fc_b": jax.random.uniform(ks[5], (out_size,), jnp.float32, -bf, bf),
    }


if __name__ == "__main__":
    key = jax.random.PRNGKey(0)
    k_param, k_x = jax.random.split(key)

    input_size, out_size = 4, 8
    B, L = 2, 24   # L=24 -> maxpool -> 12 -> maxpool -> 6 == fc in_features / input_size

    params = init_params(k_param, input_size, out_size)
    x = jax.random.normal(k_x, (B, input_size, L), dtype=jnp.float32)  # PyTorch NCL layout

    prepped = prepare_params(params, input_size, out_size)   # one-time constant prep
    out = classifier1d_forward(x, prepped, out_size=out_size)
    out = jax.block_until_ready(out)

    ref = jax.block_until_ready(ref_forward(x, params))
    assert out.shape == (B, out_size)
    assert jnp.allclose(out, ref, atol=1e-3, rtol=1e-3), (out, ref)

    print("KERNEL_OK")
</pallas_src>

<mosaic_0001>
module attributes {stable_mosaic.version = 11 : i64} {
  func.func @classifier1d_kernel(%arg0: memref<48x128xf32, #tpu.memory_space<vmem>>, %arg1: memref<128x128xf32, #tpu.memory_space<vmem>>, %arg2: memref<128x128xf32, #tpu.memory_space<vmem>>, %arg3: memref<128x128xf32, #tpu.memory_space<vmem>>, %arg4: memref<1x128xf32, #tpu.memory_space<vmem>>, %arg5: memref<1x128xf32, #tpu.memory_space<vmem>>, %arg6: memref<128x128xf32, #tpu.memory_space<vmem>>, %arg7: memref<128x128xf32, #tpu.memory_space<vmem>>, %arg8: memref<128x128xf32, #tpu.memory_space<vmem>>, %arg9: memref<1x128xf32, #tpu.memory_space<vmem>>, %arg10: memref<1x128xf32, #tpu.memory_space<vmem>>, %arg11: memref<768x128xf32, #tpu.memory_space<vmem>>, %arg12: memref<1x128xf32, #tpu.memory_space<vmem>>, %arg13: memref<2x128xf32, #tpu.memory_space<vmem>>) attributes {dimension_semantics = [], scalar_prefetch = 0 : i64, scratch_operands = 0 : i64, tpu.core_type = #tpu.core_type<tc>} {
    %c0 = arith.constant 0 : index
    %c0_0 = arith.constant 0 : index
    %0 = vector.load %arg0[%c0, %c0_0] : memref<48x128xf32, #tpu.memory_space<vmem>>, vector<48x128xf32>
    %c0_1 = arith.constant 0 : index
    %c0_2 = arith.constant 0 : index
    %1 = vector.load %arg1[%c0_1, %c0_2] : memref<128x128xf32, #tpu.memory_space<vmem>>, vector<128x128xf32>
    %c0_3 = arith.constant 0 : index
    %c0_4 = arith.constant 0 : index
    %2 = vector.load %arg2[%c0_3, %c0_4] : memref<128x128xf32, #tpu.memory_space<vmem>>, vector<128x128xf32>
    %c0_5 = arith.constant 0 : index
    %c0_6 = arith.constant 0 : index
    %3 = vector.load %arg3[%c0_5, %c0_6] : memref<128x128xf32, #tpu.memory_space<vmem>>, vector<128x128xf32>
    %c0_7 = arith.constant 0 : index
    %c0_8 = arith.constant 0 : index
    %4 = vector.load %arg4[%c0_7, %c0_8] : memref<1x128xf32, #tpu.memory_space<vmem>>, vector<1x128xf32>
    %c0_9 = arith.constant 0 : index
    %c0_10 = arith.constant 0 : index
    %5 = vector.load %arg5[%c0_9, %c0_10] : memref<1x128xf32, #tpu.memory_space<vmem>>, vector<1x128xf32>
    %6 = tpu.iota {dimensions = array<i32: 0>} : vector<48x1xi32>
    %c24_i32 = arith.constant 24 : i32
    %c0_i32 = arith.constant 0 : i32
    %7 = arith.cmpi eq, %c24_i32, %c0_i32 : i32
    %c1_i32 = arith.constant 1 : i32
    %8 = arith.select %7, %c1_i32, %c24_i32 : i32
    %9 = vector.broadcast %8 : i32 to vector<48x1xi32>
    %10 = arith.remsi %6, %9 : vector<48x1xi32>
    %c0_i32_11 = arith.constant 0 : i32
    %11 = vector.broadcast %c0_i32_11 : i32 to vector<48x1xi32>
    %12 = arith.cmpi ne, %10, %11 : vector<48x1xi32>
    %c0_i32_12 = arith.constant 0 : i32
    %13 = vector.broadcast %c0_i32_12 : i32 to vector<48x1xi32>
    %14 = arith.cmpi slt, %10, %13 : vector<48x1xi32>
    %c0_i32_13 = arith.constant 0 : i32
    %15 = arith.cmpi slt, %8, %c0_i32_13 : i32
    %16 = vector.broadcast %15 : i1 to vector<48x1xi1>
    %17 = vector.broadcast %16 : vector<48x1xi1> to vector<48x1xi1>
    %18 = arith.xori %14, %17 : vector<48x1xi1>
    %19 = arith.andi %18, %12 : vector<48x1xi1>
    %20 = vector.broadcast %8 : i32 to vector<48x1xi32>
    %21 = arith.addi %10, %20 : vector<48x1xi32>
    %22 = arith.select %19, %21, %10 : vector<48x1xi1>, vector<48x1xi32>
    %c0_i32_14 = arith.constant 0 : i32
    %23 = vector.broadcast %c0_i32_14 : i32 to vector<48x1xi32>
    %24 = arith.cmpi eq, %22, %23 : vector<48x1xi32>
    %c1_i32_15 = arith.constant 1 : i32
    %25 = tpu.dynamic_rotate %0 by %c1_i32_15 dim 0 : vector<48x128xf32>, i32 -> vector<48x128xf32>
    %cst = arith.constant 0.000000e+00 : f32
    %26 = vector.shape_cast %24 : vector<48x1xi1> to vector<48x1xi1>
    %27 = vector.broadcast %26 : vector<48x1xi1> to vector<48x128xi1>
    %28 = vector.broadcast %cst : f32 to vector<48x128xf32>
    %29 = arith.select %27, %28, %25 : vector<48x128xi1>, vector<48x128xf32>
    %c23_i32 = arith.constant 23 : i32
    %30 = vector.broadcast %c23_i32 : i32 to vector<48x1xi32>
    %31 = arith.cmpi eq, %22, %30 : vector<48x1xi32>
    %c47_i32 = arith.constant 47 : i32
    %32 = tpu.dynamic_rotate %0 by %c47_i32 dim 0 : vector<48x128xf32>, i32 -> vector<48x128xf32>
    %cst_16 = arith.constant 0.000000e+00 : f32
    %33 = vector.shape_cast %31 : vector<48x1xi1> to vector<48x1xi1>
    %34 = vector.broadcast %33 : vector<48x1xi1> to vector<48x128xi1>
    %35 = vector.broadcast %cst_16 : f32 to vector<48x128xf32>
    %36 = arith.select %34, %35, %32 : vector<48x128xi1>, vector<48x128xf32>
    %cst_17 = arith.constant dense<0.000000e+00> : vector<48x128xf32>
    %37 = tpu.matmul %0, %2, %cst_17 {dimension_numbers = #tpu.dot_dimension_numbers<[1], [0], [0], [1], [0, 0, 1, 1], [], []>} : vector<48x128xf32>, vector<128x128xf32>, vector<48x128xf32> -> vector<48x128xf32>
    %cst_18 = arith.constant dense<0.000000e+00> : vector<48x128xf32>
    %38 = tpu.matmul %29, %1, %cst_18 {dimension_numbers = #tpu.dot_dimension_numbers<[1], [0], [0], [1], [0, 0, 1, 1], [], []>} : vector<48x128xf32>, vector<128x128xf32>, vector<48x128xf32> -> vector<48x128xf32>
    %39 = arith.addf %37, %38 : vector<48x128xf32>
    %cst_19 = arith.constant dense<0.000000e+00> : vector<48x128xf32>
    %40 = tpu.matmul %36, %3, %cst_19 {dimension_numbers = #tpu.dot_dimension_numbers<[1], [0], [0], [1], [0, 0, 1, 1], [], []>} : vector<48x128xf32>, vector<128x128xf32>, vector<48x128xf32> -> vector<48x128xf32>
    %41 = arith.addf %39, %40 : vector<48x128xf32>
    %cst_20 = arith.constant dense<0.000000e+00> : vector<128xf32>
    %42 = vector.multi_reduction <add>, %41, %cst_20 [0] : vector<48x128xf32> to vector<128xf32>
    %43 = vector.shape_cast %42 : vector<128xf32> to vector<1x128xf32>
    %cst_21 = arith.constant 0.020833334 : f32
    %44 = vector.broadcast %cst_21 : f32 to vector<1x128xf32>
    %45 = arith.mulf %43, %44 : vector<1x128xf32>
    %46 = arith.mulf %41, %41 : vector<48x128xf32>
    %cst_22 = arith.constant dense<0.000000e+00> : vector<128xf32>
    %47 = vector.multi_reduction <add>, %46, %cst_22 [0] : vector<48x128xf32> to vector<128xf32>
    %48 = vector.shape_cast %47 : vector<128xf32> to vector<1x128xf32>
    %cst_23 = arith.constant 0.020833334 : f32
    %49 = vector.broadcast %cst_23 : f32 to vector<1x128xf32>
    %50 = arith.mulf %48, %49 : vector<1x128xf32>
    %51 = arith.mulf %45, %45 : vector<1x128xf32>
    %52 = arith.subf %50, %51 : vector<1x128xf32>
    %cst_24 = arith.constant 0.000000e+00 : f32
    %53 = vector.broadcast %cst_24 : f32 to vector<1x128xf32>
    %54 = arith.maximumf %52, %53 : vector<1x128xf32>
    %55 = vector.broadcast %45 : vector<1x128xf32> to vector<48x128xf32>
    %56 = arith.subf %41, %55 : vector<48x128xf32>
    %cst_25 = arith.constant 9.99999974E-6 : f32
    %57 = vector.broadcast %cst_25 : f32 to vector<1x128xf32>
    %58 = arith.addf %54, %57 : vector<1x128xf32>
    %59 = math.rsqrt %58 : vector<1x128xf32>
    %60 = arith.mulf %4, %59 : vector<1x128xf32>
    %61 = vector.broadcast %60 : vector<1x128xf32> to vector<48x128xf32>
    %62 = arith.mulf %56, %61 : vector<48x128xf32>
    %63 = vector.broadcast %5 : vector<1x128xf32> to vector<48x128xf32>
    %64 = arith.addf %62, %63 : vector<48x128xf32>
    %cst_26 = arith.constant 0.000000e+00 : f32
    %65 = vector.broadcast %cst_26 : f32 to vector<48x128xf32>
    %66 = arith.maximumf %64, %65 : vector<48x128xf32>
    %67 = vector.shape_cast %66 : vector<48x128xf32> to vector<24x256xf32>
    %68 = vector.extract_strided_slice %67 {offsets = [0, 0], sizes = [24, 128], strides = [1, 1]} : vector<24x256xf32> to vector<24x128xf32>
    %69 = vector.extract_strided_slice %67 {offsets = [0, 128], sizes = [24, 128], strides = [1, 1]} : vector<24x256xf32> to vector<24x128xf32>
    %70 = arith.maximumf %68, %69 : vector<24x128xf32>
    %c0_27 = arith.constant 0 : index
    %c0_28 = arith.constant 0 : index
    %71 = vector.load %arg6[%c0_27, %c0_28] : memref<128x128xf32, #tpu.memory_space<vmem>>, vector<128x128xf32>
    %c0_29 = arith.constant 0 : index
    %c0_30 = arith.constant 0 : index
    %72 = vector.load %arg7[%c0_29, %c0_30] : memref<128x128xf32, #tpu.memory_space<vmem>>, vector<128x128xf32>
    %c0_31 = arith.constant 0 : index
    %c0_32 = arith.constant 0 : index
    %73 = vector.load %arg8[%c0_31, %c0_32] : memref<128x128xf32, #tpu.memory_space<vmem>>, vector<128x128xf32>
    %c0_33 = arith.constant 0 : index
    %c0_34 = arith.constant 0 : index
    %74 = vector.load %arg9[%c0_33, %c0_34] : memref<1x128xf32, #tpu.memory_space<vmem>>, vector<1x128xf32>
    %c0_35 = arith.constant 0 : index
    %c0_36 = arith.constant 0 : index
    %75 = vector.load %arg10[%c0_35, %c0_36] : memref<1x128xf32, #tpu.memory_space<vmem>>, vector<1x128xf32>
    %76 = tpu.iota {dimensions = array<i32: 0>} : vector<24x1xi32>
    %c12_i32 = arith.constant 12 : i32
    %c0_i32_37 = arith.constant 0 : i32
    %77 = arith.cmpi eq, %c12_i32, %c0_i32_37 : i32
    %c1_i32_38 = arith.constant 1 : i32
    %78 = arith.select %77, %c1_i32_38, %c12_i32 : i32
    %79 = vector.broadcast %78 : i32 to vector<24x1xi32>
    %80 = arith.remsi %76, %79 : vector<24x1xi32>
    %c0_i32_39 = arith.constant 0 : i32
    %81 = vector.broadcast %c0_i32_39 : i32 to vector<24x1xi32>
    %82 = arith.cmpi ne, %80, %81 : vector<24x1xi32>
    %c0_i32_40 = arith.constant 0 : i32
    %83 = vector.broadcast %c0_i32_40 : i32 to vector<24x1xi32>
    %84 = arith.cmpi slt, %80, %83 : vector<24x1xi32>
    %c0_i32_41 = arith.constant 0 : i32
    %85 = arith.cmpi slt, %78, %c0_i32_41 : i32
    %86 = vector.broadcast %85 : i1 to vector<24x1xi1>
    %87 = vector.broadcast %86 : vector<24x1xi1> to vector<24x1xi1>
    %88 = arith.xori %84, %87 : vector<24x1xi1>
    %89 = arith.andi %88, %82 : vector<24x1xi1>
    %90 = vector.broadcast %78 : i32 to vector<24x1xi32>
    %91 = arith.addi %80, %90 : vector<24x1xi32>
    %92 = arith.select %89, %91, %80 : vector<24x1xi1>, vector<24x1xi32>
    %c0_i32_42 = arith.constant 0 : i32
    %93 = vector.broadcast %c0_i32_42 : i32 to vector<24x1xi32>
    %94 = arith.cmpi eq, %92, %93 : vector<24x1xi32>
    %c1_i32_43 = arith.constant 1 : i32
    %95 = tpu.dynamic_rotate %70 by %c1_i32_43 dim 0 : vector<24x128xf32>, i32 -> vector<24x128xf32>
    %cst_44 = arith.constant 0.000000e+00 : f32
    %96 = vector.shape_cast %94 : vector<24x1xi1> to vector<24x1xi1>
    %97 = vector.broadcast %96 : vector<24x1xi1> to vector<24x128xi1>
    %98 = vector.broadcast %cst_44 : f32 to vector<24x128xf32>
    %99 = arith.select %97, %98, %95 : vector<24x128xi1>, vector<24x128xf32>
    %c11_i32 = arith.constant 11 : i32
    %100 = vector.broadcast %c11_i32 : i32 to vector<24x1xi32>
    %101 = arith.cmpi eq, %92, %100 : vector<24x1xi32>
    %c23_i32_45 = arith.constant 23 : i32
    %102 = tpu.dynamic_rotate %70 by %c23_i32_45 dim 0 : vector<24x128xf32>, i32 -> vector<24x128xf32>
    %cst_46 = arith.constant 0.000000e+00 : f32
    %103 = vector.shape_cast %101 : vector<24x1xi1> to vector<24x1xi1>
    %104 = vector.broadcast %103 : vector<24x1xi1> to vector<24x128xi1>
    %105 = vector.broadcast %cst_46 : f32 to vector<24x128xf32>
    %106 = arith.select %104, %105, %102 : vector<24x128xi1>, vector<24x128xf32>
    %cst_47 = arith.constant dense<0.000000e+00> : vector<24x128xf32>
    %107 = tpu.matmul %70, %72, %cst_47 {dimension_numbers = #tpu.dot_dimension_numbers<[1], [0], [0], [1], [0, 0, 1, 1], [], []>} : vector<24x128xf32>, vector<128x128xf32>, vector<24x128xf32> -> vector<24x128xf32>
    %cst_48 = arith.constant dense<0.000000e+00> : vector<24x128xf32>
    %108 = tpu.matmul %99, %71, %cst_48 {dimension_numbers = #tpu.dot_dimension_numbers<[1], [0], [0], [1], [0, 0, 1, 1], [], []>} : vector<24x128xf32>, vector<128x128xf32>, vector<24x128xf32> -> vector<24x128xf32>
    %109 = arith.addf %107, %108 : vector<24x128xf32>
    %cst_49 = arith.constant dense<0.000000e+00> : vector<24x128xf32>
    %110 = tpu.matmul %106, %73, %cst_49 {dimension_numbers = #tpu.dot_dimension_numbers<[1], [0], [0], [1], [0, 0, 1, 1], [], []>} : vector<24x128xf32>, vector<128x128xf32>, vector<24x128xf32> -> vector<24x128xf32>
    %111 = arith.addf %109, %110 : vector<24x128xf32>
    %cst_50 = arith.constant dense<0.000000e+00> : vector<128xf32>
    %112 = vector.multi_reduction <add>, %111, %cst_50 [0] : vector<24x128xf32> to vector<128xf32>
    %113 = vector.shape_cast %112 : vector<128xf32> to vector<1x128xf32>
    %cst_51 = arith.constant 0.0416666679 : f32
    %114 = vector.broadcast %cst_51 : f32 to vector<1x128xf32>
    %115 = arith.mulf %113, %114 : vector<1x128xf32>
    %116 = arith.mulf %111, %111 : vector<24x128xf32>
    %cst_52 = arith.constant dense<0.000000e+00> : vector<128xf32>
    %117 = vector.multi_reduction <add>, %116, %cst_52 [0] : vector<24x128xf32> to vector<128xf32>
    %118 = vector.shape_cast %117 : vector<128xf32> to vector<1x128xf32>
    %cst_53 = arith.constant 0.0416666679 : f32
    %119 = vector.broadcast %cst_53 : f32 to vector<1x128xf32>
    %120 = arith.mulf %118, %119 : vector<1x128xf32>
    %121 = arith.mulf %115, %115 : vector<1x128xf32>
    %122 = arith.subf %120, %121 : vector<1x128xf32>
    %cst_54 = arith.constant 0.000000e+00 : f32
    %123 = vector.broadcast %cst_54 : f32 to vector<1x128xf32>
    %124 = arith.maximumf %122, %123 : vector<1x128xf32>
    %125 = vector.broadcast %115 : vector<1x128xf32> to vector<24x128xf32>
    %126 = arith.subf %111, %125 : vector<24x128xf32>
    %cst_55 = arith.constant 9.99999974E-6 : f32
    %127 = vector.broadcast %cst_55 : f32 to vector<1x128xf32>
    %128 = arith.addf %124, %127 : vector<1x128xf32>
    %129 = math.rsqrt %128 : vector<1x128xf32>
    %130 = arith.mulf %74, %129 : vector<1x128xf32>
    %131 = vector.broadcast %130 : vector<1x128xf32> to vector<24x128xf32>
    %132 = arith.mulf %126, %131 : vector<24x128xf32>
    %133 = vector.broadcast %75 : vector<1x128xf32> to vector<24x128xf32>
    %134 = arith.addf %132, %133 : vector<24x128xf32>
    %cst_56 = arith.constant 0.000000e+00 : f32
    %135 = vector.broadcast %cst_56 : f32 to vector<24x128xf32>
    %136 = arith.maximumf %134, %135 : vector<24x128xf32>
    %137 = vector.shape_cast %136 : vector<24x128xf32> to vector<12x256xf32>
    %138 = vector.extract_strided_slice %137 {offsets = [0, 0], sizes = [12, 128], strides = [1, 1]} : vector<12x256xf32> to vector<12x128xf32>
    %139 = vector.extract_strided_slice %137 {offsets = [0, 128], sizes = [12, 128], strides = [1, 1]} : vector<12x256xf32> to vector<12x128xf32>
    %140 = arith.maximumf %138, %139 : vector<12x128xf32>
    %141 = vector.shape_cast %140 : vector<12x128xf32> to vector<2x768xf32>
    %c0_57 = arith.constant 0 : index
    %c0_58 = arith.constant 0 : index
    %142 = vector.load %arg11[%c0_57, %c0_58] : memref<768x128xf32, #tpu.memory_space<vmem>>, vector<768x128xf32>
    %cst_59 = arith.constant dense<0.000000e+00> : vector<2x128xf32>
    %143 = tpu.matmul %141, %142, %cst_59 {dimension_numbers = #tpu.dot_dimension_numbers<[1], [0], [0], [1], [0, 0, 1, 1], [], []>} : vector<2x768xf32>, vector<768x128xf32>, vector<2x128xf32> -> vector<2x128xf32>
    %c0_60 = arith.constant 0 : index
    %c0_61 = arith.constant 0 : index
    %144 = vector.load %arg12[%c0_60, %c0_61] : memref<1x128xf32, #tpu.memory_space<vmem>>, vector<1x128xf32>
    %145 = vector.broadcast %144 : vector<1x128xf32> to vector<2x128xf32>
    %146 = arith.addf %143, %145 : vector<2x128xf32>
    %c0_62 = arith.constant 0 : index
    %c0_63 = arith.constant 0 : index
    %147 = vector.load %arg13[%c0_62, %c0_63] : memref<2x128xf32, #tpu.memory_space<vmem>>, vector<2x128xf32>
    tpu.vector_store %arg13[%c0_62, %c0_63], %146 {strides = array<i32>} : memref<2x128xf32, #tpu.memory_space<vmem>>, vector<2x128xf32>,
    return
  }
}

</mosaic_0001>

<llo_original>
// kernel: classifier1d_forward.1
$region0: #{classifier1d_forward.1}
  #allocation0 [shape = 'u32[]', space=smem, size = 0x4, offset = 0x4, fixed_abs, tag = 'smem constant byte address 0x4 - core index']
  #allocation1 [shape = 'u32[144,128]{1,0:T(1,128)}', space=vmem, size = 0x12000, scoped, tag = 'internal scratch']
  %s0 = inlined_call_operand.vmem [shape: f32[48,128], index: 0, kind: input, shape index: {}]
  %s1 = inlined_call_operand.vmem [shape: f32[128,128], index: 1, kind: input, shape index: {}]
  %s2 = inlined_call_operand.hbm [shape: f32[128,128], index: 2, kind: input, shape index: {}]
  %s3 = inlined_call_operand.hbm [shape: f32[128,128], index: 3, kind: input, shape index: {}]
  %s4 = inlined_call_operand.vmem [shape: f32[1,128], index: 4, kind: input, shape index: {}]
  %s5 = inlined_call_operand.vmem [shape: f32[1,128], index: 5, kind: input, shape index: {}]
  %s6 = inlined_call_operand.hbm [shape: f32[128,128], index: 6, kind: input, shape index: {}]
  %s7 = inlined_call_operand.hbm [shape: f32[128,128], index: 7, kind: input, shape index: {}]
  %s8 = inlined_call_operand.hbm [shape: f32[128,128], index: 8, kind: input, shape index: {}]
  %s9 = inlined_call_operand.vmem [shape: f32[1,128], index: 9, kind: input, shape index: {}]
  %s10 = inlined_call_operand.vmem [shape: f32[1,128], index: 10, kind: input, shape index: {}]
  %s11 = inlined_call_operand.hbm [shape: f32[768,128], index: 11, kind: input, shape index: {}]
  %s12 = inlined_call_operand.vmem [shape: f32[1,128], index: 12, kind: input, shape index: {}]
  %s13 = inlined_call_operand.hbm [shape: f32[2,128], index: 13, kind: output, shape index: {}]
  %s14 = sld [smem:[#allocation0]]
  $region86: #{classifier1d_forward.1} parent=0
    _
  %s16 = ssub.s32 1, %s14
  %s17 = scalar_select 0, %s16, %s14
  $region1: #{classifier1d_forward.1} parent=0
    #allocation2 [shape = 'u8[65536]{0}', space=vmem, size = 0x10000, scoped, tag = 'input window, operand 2, single buffered']
    #allocation3 [shape = 's32[1]{0}', space=sflag, size = 0x4, scoped, tag = 'scoped memory for classifier1d_forward.1']
    #allocation4 [shape = 's32[1]{0}', space=sflag, size = 0x4, scoped, tag = 'scoped memory for classifier1d_forward.1']
    #allocation5 [shape = 'u8[65536]{0}', space=vmem, size = 0x10000, scoped, tag = 'input window, operand 3, single buffered']
    #allocation6 [shape = 's32[1]{0}', space=sflag, size = 0x4, scoped, tag = 'scoped memory for classifier1d_forward.1']
    #allocation7 [shape = 'u8[65536]{0}', space=vmem, size = 0x10000, scoped, tag = 'input window, operand 6, single buffered']
    #allocation8 [shape = 'u8[65536]{0}', space=vmem, size = 0x10000, scoped, tag = 'input window, operand 7, single buffered']
    #allocation9 [shape = 's32[1]{0}', space=sflag, size = 0x4, scoped, tag = 'scoped memory for classifier1d_forward.1']
    #allocation10 [shape = 'u8[65536]{0}', space=vmem, size = 0x10000, scoped, tag = 'input window, operand 8, single buffered']
    #allocation11 [shape = 'u8[393216]{0}', space=vmem, size = 0x60000, scoped, tag = 'input window, operand 11, single buffered']
    #allocation12 [shape = 's32[1]{0}', space=sflag, size = 0x4, scoped, tag = 'scoped memory for classifier1d_forward.1']
    #allocation13 [shape = 'u8[1024]{0}', space=vmem, size = 0x400, scoped, tag = 'output window, operand 0, single buffered']
    %18 = vsyncpa [#allocation3], 0
    %19 = vsyncpa [#allocation6], 0
    %20 = vsyncpa [#allocation9], 0
    %21 = vsyncpa [#allocation12], 0
    %22 = vsyncpa [#allocation4], 0
    // Predicated region
    $region2: #{classifier1d_forward.1} parent=1 // pred_check
      _
    $region3: #{classifier1d_forward.1} parent=1 // pred_check_branch
      %24 = sbr.rel (0) target = $region5
    $region4: #{classifier1d_forward.1} parent=1 // pred_region
      _
    $region5: #{classifier1d_forward.1} parent=1 // pred_fallthru
      _
    // Predicated region
    $region6: #{classifier1d_forward.1} parent=1 // pred_check
      _
    $region7: #{classifier1d_forward.1} parent=1 // pred_check_branch
      %26 = sbr.rel (0) target = $region9
    $region8: #{classifier1d_forward.1} parent=1 // pred_region
      _
    $region9: #{classifier1d_forward.1} parent=1 // pred_fallthru
      _
    // Predicated region
    $region10: #{classifier1d_forward.1} parent=1 // pred_check
      _
    $region11: #{classifier1d_forward.1} parent=1 // pred_check_branch
      %28 = sbr.rel (0) target = $region13
    $region12: #{classifier1d_forward.1} parent=1 // pred_region
      %s30 = ssub.s32 2048, 2048
      %31 = vsyncadd [#allocation3], %s30
      %s32 = sshll.u32 [#allocation2], 4
      %s33 = int_to_ptr.vmem [resolvable:$true] %s32
      %38 = dma.hbm_to_vmem [thread:$0]  %s2, 2048, %s33, [#allocation3], 128, 128, 8
    $region13: #{classifier1d_forward.1} parent=1 // pred_fallthru
      _
    // Predicated region
    $region14: #{classifier1d_forward.1} parent=1 // pred_check
      _
    $region15: #{classifier1d_forward.1} parent=1 // pred_check_branch
      %40 = sbr.rel (0) target = $region17
    $region16: #{classifier1d_forward.1} parent=1 // pred_region
      %s42 = ssub.s32 2048, 2048
      %43 = vsyncadd [#allocation6], %s42
      %s44 = sshll.u32 [#allocation5], 4
      %s45 = int_to_ptr.vmem [resolvable:$true] %s44
      %50 = dma.hbm_to_vmem [thread:$0]  %s3, 2048, %s45, [#allocation6], 128, 128, 8
    $region17: #{classifier1d_forward.1} parent=1 // pred_fallthru
      _
    // Predicated region
    $region18: #{classifier1d_forward.1} parent=1 // pred_check
      _
    $region19: #{classifier1d_forward.1} parent=1 // pred_check_branch
      %52 = sbr.rel (0) target = $region21
    $region20: #{classifier1d_forward.1} parent=1 // pred_region
      _
    $region21: #{classifier1d_forward.1} parent=1 // pred_fallthru
      _
    // Predicated region
    $region22: #{classifier1d_forward.1} parent=1 // pred_check
      _
    $region23: #{classifier1d_forward.1} parent=1 // pred_check_branch
      %54 = sbr.rel (0) target = $region25
    $region24: #{classifier1d_forward.1} parent=1 // pred_region
      _
    $region25: #{classifier1d_forward.1} parent=1 // pred_fallthru
      _
    // Predicated region
    $region26: #{classifier1d_forward.1} parent=1 // pred_check
      _
    $region27: #{classifier1d_forward.1} parent=1 // pred_check_branch
      %56 = sbr.rel (0) target = $region29
    $region28: #{classifier1d_forward.1} parent=1 // pred_region
      %s58 = ssub.s32 2048, 2048
      %59 = vsyncadd [#allocation6], %s58
      %s60 = sshll.u32 [#allocation7], 4
      %s61 = int_to_ptr.vmem [resolvable:$true] %s60
      %66 = dma.hbm_to_vmem [thread:$0]  %s6, 2048, %s61, [#allocation6], 128, 128, 8
    $region29: #{classifier1d_forward.1} parent=1 // pred_fallthru
      _
    // Predicated region
    $region30: #{classifier1d_forward.1} parent=1 // pred_check
      _
    $region31: #{classifier1d_forward.1} parent=1 // pred_check_branch
      %68 = sbr.rel (0) target = $region33
    $region32: #{classifier1d_forward.1} parent=1 // pred_region
      %s70 = ssub.s32 2048, 2048
      %71 = vsyncadd [#allocation9], %s70
      %s72 = sshll.u32 [#allocation8], 4
      %s73 = int_to_ptr.vmem [resolvable:$true] %s72
      %78 = dma.hbm_to_vmem [thread:$0]  %s7, 2048, %s73, [#allocation9], 128, 128, 8
    $region33: #{classifier1d_forward.1} parent=1 // pred_fallthru
      _
    // Predicated region
    $region34: #{classifier1d_forward.1} parent=1 // pred_check
      _
    $region35: #{classifier1d_forward.1} parent=1 // pred_check_branch
      %80 = sbr.rel (0) target = $region37
    $region36: #{classifier1d_forward.1} parent=1 // pred_region
      %s82 = ssub.s32 2048, 2048
      %83 = vsyncadd [#allocation9], %s82
      %s84 = sshll.u32 [#allocation10], 4
      %s85 = int_to_ptr.vmem [resolvable:$true] %s84
      %90 = dma.hbm_to_vmem [thread:$0]  %s8, 2048, %s85, [#allocation9], 128, 128, 8
    $region37: #{classifier1d_forward.1} parent=1 // pred_fallthru
      _
    // Predicated region
    $region38: #{classifier1d_forward.1} parent=1 // pred_check
      _
    $region39: #{classifier1d_forward.1} parent=1 // pred_check_branch
      %92 = sbr.rel (0) target = $region41
    $region40: #{classifier1d_forward.1} parent=1 // pred_region
      _
    $region41: #{classifier1d_forward.1} parent=1 // pred_fallthru
      _
    // Predicated region
    $region42: #{classifier1d_forward.1} parent=1 // pred_check
      _
    $region43: #{classifier1d_forward.1} parent=1 // pred_check_branch
      %94 = sbr.rel (0) target = $region45
    $region44: #{classifier1d_forward.1} parent=1 // pred_region
      _
    $region45: #{classifier1d_forward.1} parent=1 // pred_fallthru
      _
    // Predicated region
    $region46: #{classifier1d_forward.1} parent=1 // pred_check
      _
    $region47: #{classifier1d_forward.1} parent=1 // pred_check_branch
      %96 = sbr.rel (0) target = $region49
    $region48: #{classifier1d_forward.1} parent=1 // pred_region
      %s98 = ssub.s32 12288, 12288
      %99 = vsyncadd [#allocation12], %s98
      %s100 = sshll.u32 [#allocation11], 4
      %s101 = int_to_ptr.vmem [resolvable:$true] %s100
      %106 = dma.hbm_to_vmem [thread:$0]  %s11, 12288, %s101, [#allocation12], 128, 128, 8
    $region49: #{classifier1d_forward.1} parent=1 // pred_fallthru
      _
    // Predicated region
    $region50: #{classifier1d_forward.1} parent=1 // pred_check
      _
    $region51: #{classifier1d_forward.1} parent=1 // pred_check_branch
      %108 = sbr.rel (0) target = $region53
    $region52: #{classifier1d_forward.1} parent=1 // pred_region
      _
    $region53: #{classifier1d_forward.1} parent=1 // pred_fallthru
      _
    // Predicated region
    $region54: #{classifier1d_forward.1} parent=1 // pred_check
      _
    $region55: #{classifier1d_forward.1} parent=1 // pred_check_branch
      %110 = sbr.rel (0) target = $region57
    $region56: #{classifier1d_forward.1} parent=1 // pred_region
      %111 = dma.done [#allocation3], 2048
    $region57: #{classifier1d_forward.1} parent=1 // pred_fallthru
      _
    // Predicated region
    $region58: #{classifier1d_forward.1} parent=1 // pred_check
      _
    $region59: #{classifier1d_forward.1} parent=1 // pred_check_branch
      %113 = sbr.rel (0) target = $region61
    $region60: #{classifier1d_forward.1} parent=1 // pred_region
      %114 = dma.done [#allocation6], 2048
    $region61: #{classifier1d_forward.1} parent=1 // pred_fallthru
      _
    // Predicated region
    $region62: #{classifier1d_forward.1} parent=1 // pred_check
      _
    $region63: #{classifier1d_forward.1} parent=1 // pred_check_branch
      %116 = sbr.rel (0) target = $region65
    $region64: #{classifier1d_forward.1} parent=1 // pred_region
      %117 = dma.done [#allocation6], 2048
    $region65: #{classifier1d_forward.1} parent=1 // pred_fallthru
      _
    // Predicated region
    $region66: #{classifier1d_forward.1} parent=1 // pred_check
      _
    $region67: #{classifier1d_forward.1} parent=1 // pred_check_branch
      %119 = sbr.rel (0) target = $region69
    $region68: #{classifier1d_forward.1} parent=1 // pred_region
      %120 = dma.done [#allocation9], 2048
    $region69: #{classifier1d_forward.1} parent=1 // pred_fallthru
      _
    // Predicated region
    $region70: #{classifier1d_forward.1} parent=1 // pred_check
      _
    $region71: #{classifier1d_forward.1} parent=1 // pred_check_branch
      %122 = sbr.rel (0) target = $region73
    $region72: #{classifier1d_forward.1} parent=1 // pred_region
      %123 = dma.done [#allocation9], 2048
    $region73: #{classifier1d_forward.1} parent=1 // pred_fallthru
      _
    // Predicated region
    $region74: #{classifier1d_forward.1} parent=1 // pred_check
      _
    $region75: #{classifier1d_forward.1} parent=1 // pred_check_branch
      %125 = sbr.rel (0) target = $region77
    $region76: #{classifier1d_forward.1} parent=1 // pred_region
      %126 = dma.done [#allocation12], 12288
    $region77: #{classifier1d_forward.1} parent=1 // pred_fallthru
      _
    %v127 = vld [vmem:[%s0] sm:$0xff]
    %v128 = vld [vmem:[%s0 + $0x8] sm:$0xff]
    %v129 = vld [vmem:[%s0 + $0x10] sm:$0xff]
    %v130 = vld [vmem:[%s0 + $0x18] sm:$0xff]
    %v131 = vld [vmem:[%s0 + $0x20] sm:$0xff]
    %v132 = vld [vmem:[%s0 + $0x28] sm:$0xff]
    %v133 = vld [vmem:[%s1] sm:$0xff]
    %v134 = vld [vmem:[%s1 + $0x8] sm:$0xff]
    %v135 = vld [vmem:[%s1 + $0x10] sm:$0xff]
    %v136 = vld [vmem:[%s1 + $0x18] sm:$0xff]
    %v137 = vld [vmem:[%s1 + $0x20] sm:$0xff]
    %v138 = vld [vmem:[%s1 + $0x28] sm:$0xff]
    %v139 = vld [vmem:[%s1 + $0x30] sm:$0xff]
    %v140 = vld [vmem:[%s1 + $0x38] sm:$0xff]
    %v141 = vld [vmem:[%s1 + $0x40] sm:$0xff]
    %v142 = vld [vmem:[%s1 + $0x48] sm:$0xff]
    %v143 = vld [vmem:[%s1 + $0x50] sm:$0xff]
    %v144 = vld [vmem:[%s1 + $0x58] sm:$0xff]
    %v145 = vld [vmem:[%s1 + $0x60] sm:$0xff]
    %v146 = vld [vmem:[%s1 + $0x68] sm:$0xff]
    %v147 = vld [vmem:[%s1 + $0x70] sm:$0xff]
    %v148 = vld [vmem:[%s1 + $0x78] sm:$0xff]
    %v149 = vld [vmem:[#allocation2] sm:$0xff]
    %v150 = vld [vmem:[#allocation2 + $0x8] sm:$0xff]
    %v151 = vld [vmem:[#allocation2 + $0x10] sm:$0xff]
    %v152 = vld [vmem:[#allocation2 + $0x18] sm:$0xff]
    %v153 = vld [vmem:[#allocation2 + $0x20] sm:$0xff]
    %v154 = vld [vmem:[#allocation2 + $0x28] sm:$0xff]
    %v155 = vld [vmem:[#allocation2 + $0x30] sm:$0xff]
    %v156 = vld [vmem:[#allocation2 + $0x38] sm:$0xff]
    %v157 = vld [vmem:[#allocation2 + $0x40] sm:$0xff]
    %v158 = vld [vmem:[#allocation2 + $0x48] sm:$0xff]
    %v159 = vld [vmem:[#allocation2 + $0x50] sm:$0xff]
    %v160 = vld [vmem:[#allocation2 + $0x58] sm:$0xff]
    %v161 = vld [vmem:[#allocation2 + $0x60] sm:$0xff]
    %v162 = vld [vmem:[#allocation2 + $0x68] sm:$0xff]
    %v163 = vld [vmem:[#allocation2 + $0x70] sm:$0xff]
    %v164 = vld [vmem:[#allocation2 + $0x78] sm:$0xff]
    %v165 = vld [vmem:[#allocation5] sm:$0xff]
    %v166 = vld [vmem:[#allocation5 + $0x8] sm:$0xff]
    %v167 = vld [vmem:[#allocation5 + $0x10] sm:$0xff]
    %v168 = vld [vmem:[#allocation5 + $0x18] sm:$0xff]
    %v169 = vld [vmem:[#allocation5 + $0x20] sm:$0xff]
    %v170 = vld [vmem:[#allocation5 + $0x28] sm:$0xff]
    %v171 = vld [vmem:[#allocation5 + $0x30] sm:$0xff]
    %v172 = vld [vmem:[#allocation5 + $0x38] sm:$0xff]
    %v173 = vld [vmem:[#allocation5 + $0x40] sm:$0xff]
    %v174 = vld [vmem:[#allocation5 + $0x48] sm:$0xff]
    %v175 = vld [vmem:[#allocation5 + $0x50] sm:$0xff]
    %v176 = vld [vmem:[#allocation5 + $0x58] sm:$0xff]
    %v177 = vld [vmem:[#allocation5 + $0x60] sm:$0xff]
    %v178 = vld [vmem:[#allocation5 + $0x68] sm:$0xff]
    %v179 = vld [vmem:[#allocation5 + $0x70] sm:$0xff]
    %v180 = vld [vmem:[#allocation5 + $0x78] sm:$0xff]
    %v181 = vld [vmem:[%s4] sm:$0x1]
    %v182 = vld [vmem:[%s5] sm:$0x1]
    %v183 = vlaneseq
    %v184 = vshrl.u32 %v183, 7
    %v185 = vadd.s32 %v184, 8
    %v186 = vadd.s32 %v184, 16
    %v187 = vadd.s32 %v184, 24
    %v188 = vadd.s32 %v184, 32
    %v189 = vadd.s32 %v184, 40
    %vm190 = vcmp.lt.s32.totalorder %v184, 0
    %v191 = vsub.s32 0, %v184
    %v192 = vsel %vm190, %v191, %v184
    %v193 = vmul.u32.u64.compose %v192, 2863311531
    %v194 = vextract.low.u32 %v193
    %v195 = vextract.high.u32 %v193
    %v196 = vshrl.u32 %v195, 4
    %v197 = vmul.u32 %v196, 24
    %v198 = vsub.s32 %v192, %v197
    %v199 = vsub.s32 0, %v198
    %v200 = vsel %vm190, %v199, %v198
    %vm201 = vcmp.lt.s32.totalorder %v185, 0
    %v202 = vsub.s32 0, %v185
    %v203 = vsel %vm201, %v202, %v185
    %v204 = vmul.u32.u64.compose %v203, 2863311531
    %v205 = vextract.low.u32 %v204
    %v206 = vextract.high.u32 %v204
    %v207 = vshrl.u32 %v206, 4
    %v208 = vmul.u32 %v207, 24
    %v209 = vsub.s32 %v203, %v208
    %v210 = vsub.s32 0, %v209
    %v211 = vsel %vm201, %v210, %v209
    %vm212 = vcmp.lt.s32.totalorder %v186, 0
    %v213 = vsub.s32 0, %v186
    %v214 = vsel %vm212, %v213, %v186
    %v215 = vmul.u32.u64.compose %v214, 2863311531
    %v216 = vextract.low.u32 %v215
    %v217 = vextract.high.u32 %v215
    %v218 = vshrl.u32 %v217, 4
    %v219 = vmul.u32 %v218, 24
    %v220 = vsub.s32 %v214, %v219
    %v221 = vsub.s32 0, %v220
    %v222 = vsel %vm212, %v221, %v220
    %vm223 = vcmp.lt.s32.totalorder %v187, 0
    %v224 = vsub.s32 0, %v187
    %v225 = vsel %vm223, %v224, %v187
    %v226 = vmul.u32.u64.compose %v225, 2863311531
    %v227 = vextract.low.u32 %v226
    %v228 = vextract.high.u32 %v226
    %v229 = vshrl.u32 %v228, 4
    %v230 = vmul.u32 %v229, 24
    %v231 = vsub.s32 %v225, %v230
    %v232 = vsub.s32 0, %v231
    %v233 = vsel %vm223, %v232, %v231
    %vm234 = vcmp.lt.s32.totalorder %v188, 0
    %v235 = vsub.s32 0, %v188
    %v236 = vsel %vm234, %v235, %v188
    %v237 = vmul.u32.u64.compose %v236, 2863311531
    %v238 = vextract.low.u32 %v237
    %v239 = vextract.high.u32 %v237
    %v240 = vshrl.u32 %v239, 4
    %v241 = vmul.u32 %v240, 24
    %v242 = vsub.s32 %v236, %v241
    %v243 = vsub.s32 0, %v242
    %v244 = vsel %vm234, %v243, %v242
    %vm245 = vcmp.lt.s32.totalorder %v189, 0
    %v246 = vsub.s32 0, %v189
    %v247 = vsel %vm245, %v246, %v189
    %v248 = vmul.u32.u64.compose %v247, 2863311531
    %v249 = vextract.low.u32 %v248
    %v250 = vextract.high.u32 %v248
    %v251 = vshrl.u32 %v250, 4
    %v252 = vmul.u32 %v251, 24
    %v253 = vsub.s32 %v247, %v252
    %v254 = vsub.s32 0, %v253
    %v255 = vsel %vm245, %v254, %v253
    %vm256 = vcmp.ne.s32.totalorder %v200, 0
    %vm257 = vcmp.ne.s32.totalorder %v211, 0
    %vm258 = vcmp.ne.s32.totalorder %v222, 0
    %vm259 = vcmp.ne.s32.totalorder %v233, 0
    %vm260 = vcmp.ne.s32.totalorder %v244, 0
    %vm261 = vcmp.ne.s32.totalorder %v255, 0
    %vm262 = vcmp.lt.s32.totalorder %v200, 0
    %vm263 = vcmp.lt.s32.totalorder %v211, 0
    %vm264 = vcmp.lt.s32.totalorder %v222, 0
    %vm265 = vcmp.lt.s32.totalorder %v233, 0
    %vm266 = vcmp.lt.s32.totalorder %v244, 0
    %vm267 = vcmp.lt.s32.totalorder %v255, 0
    %vm268 = vmand %vm262, %vm256
    %vm269 = vmand %vm263, %vm257
    %vm270 = vmand %vm264, %vm258
    %vm271 = vmand %vm265, %vm259
    %vm272 = vmand %vm266, %vm260
    %vm273 = vmand %vm267, %vm261
    %v274 = vadd.s32 %v200, 24
    %v275 = vadd.s32 %v211, 24
    %v276 = vadd.s32 %v222, 24
    %v277 = vadd.s32 %v233, 24
    %v278 = vadd.s32 %v244, 24
    %v279 = vadd.s32 %v255, 24
    %v280 = vsel %vm268, %v274, %v200
    %v281 = vsel %vm269, %v275, %v211
    %v282 = vsel %vm270, %v276, %v222
    %v283 = vsel %vm271, %v277, %v233
    %v284 = vsel %vm272, %v278, %v244
    %v285 = vsel %vm273, %v279, %v255
    %vm286 = vcmp.eq.s32.totalorder %v280, 0
    %vm287 = vcmp.eq.s32.totalorder %v281, 0
    %vm288 = vcmp.eq.s32.totalorder %v282, 0
    %vm289 = vcmp.eq.s32.totalorder %v283, 0
    %vm290 = vcmp.eq.s32.totalorder %v284, 0
    %vm291 = vcmp.eq.s32.totalorder %v285, 0
    %v292 = vrot.slane %v127, 7
    %v293 = vrot.slane %v128, 7
    %v294 = vrot.slane %v129, 7
    %v295 = vrot.slane %v130, 7
    %v296 = vrot.slane %v131, 7
    %v297 = vrot.slane %v132, 7
    %vm298 = vcmp.lt.s32.totalorder %v184, 1
    %v299 = vsel %vm298, %v296, %v297
    %v300 = vsel %vm298, %v295, %v296
    %v301 = vsel %vm298, %v294, %v295
    %v302 = vsel %vm298, %v293, %v294
    %v303 = vsel %vm298, %v292, %v293
    %v304 = vsel %vm298, %v297, %v292
    %v305 = vsel %vm286, 1, 0
    %v306 = vsel %vm287, 1, 0
    %v307 = vsel %vm288, 1, 0
    %v308 = vsel %vm289, 1, 0
    %v309 = vsel %vm290, 1, 0
    %v310 = vsel %vm291, 1, 0
    %vm311 = vcmp.eq.s32.totalorder %v305, 1
    %vm312 = vcmp.eq.s32.totalorder %v306, 1
    %vm313 = vcmp.eq.s32.totalorder %v307, 1
    %vm314 = vcmp.eq.s32.totalorder %v308, 1
    %vm315 = vcmp.eq.s32.totalorder %v309, 1
    %vm316 = vcmp.eq.s32.totalorder %v310, 1
    %v317 = vsel %vm311, 0.0, %v304
    %v318 = vsel %vm312, 0.0, %v303
    %v319 = vsel %vm313, 0.0, %v302
    %v320 = vsel %vm314, 0.0, %v301
    %v321 = vsel %vm315, 0.0, %v300
    %v322 = vsel %vm316, 0.0, %v299
    %vm323 = vcmp.eq.s32.totalorder %v280, 23
    %vm324 = vcmp.eq.s32.totalorder %v281, 23
    %vm325 = vcmp.eq.s32.totalorder %v282, 23
    %vm326 = vcmp.eq.s32.totalorder %v283, 23
    %vm327 = vcmp.eq.s32.totalorder %v284, 23
    %vm328 = vcmp.eq.s32.totalorder %v285, 23
    %v329 = vrot.slane %v127, 1
    %v330 = vrot.slane %v128, 1
    %v331 = vrot.slane %v129, 1
    %v332 = vrot.slane %v130, 1
    %v333 = vrot.slane %v131, 1
    %v334 = vrot.slane %v132, 1
    %vm335 = vcmp.lt.s32.totalorder %v184, 7
    %v336 = vsel %vm335, %v333, %v334
    %v337 = vsel %vm335, %v332, %v333
    %v338 = vsel %vm335, %v331, %v332
    %v339 = vsel %vm335, %v330, %v331
    %v340 = vsel %vm335, %v329, %v330
    %v341 = vsel %vm335, %v334, %v329
    %v342 = vsel %vm323, 1, 0
    %v343 = vsel %vm324, 1, 0
    %v344 = vsel %vm325, 1, 0
    %v345 = vsel %vm326, 1, 0
    %v346 = vsel %vm327, 1, 0
    %v347 = vsel %vm328, 1, 0
    %vm348 = vcmp.eq.s32.totalorder %v342, 1
    %vm349 = vcmp.eq.s32.totalorder %v343, 1
    %vm350 = vcmp.eq.s32.totalorder %v344, 1
    %vm351 = vcmp.eq.s32.totalorder %v345, 1
    %vm352 = vcmp.eq.s32.totalorder %v346, 1
    %vm353 = vcmp.eq.s32.totalorder %v347, 1
    %v354 = vsel %vm348, 0.0, %v340
    %v355 = vsel %vm349, 0.0, %v339
    %v356 = vsel %vm350, 0.0, %v338
    %v357 = vsel %vm351, 0.0, %v337
    %v358 = vsel %vm352, 0.0, %v336
    %v359 = vsel %vm353, 0.0, %v341
    %360 = vmatprep.subr.mxu0 0.0
    %361 = vmatpush1.msra.mxu0 %v133
    %362 = vmatprep.subr.mxu0 0.0
    %363 = vmatpush1.msra.mxu0 %v134
    %364 = vmatprep.subr.mxu0 0.0
    %365 = vmatpush1.msra.mxu0 %v135
    %366 = vmatprep.subr.mxu0 0.0
    %367 = vmatpush1.msra.mxu0 %v136
    %368 = vmatprep.subr.mxu0 0.0
    %369 = vmatpush1.msra.mxu0 %v137
    %370 = vmatprep.subr.mxu0 0.0
    %371 = vmatpush1.msra.mxu0 %v138
    %372 = vmatprep.subr.mxu0 0.0
    %373 = vmatpush1.msra.mxu0 %v139
    %374 = vmatprep.subr.mxu0 0.0
    %375 = vmatpush1.msra.mxu0 %v140
    %376 = vmatprep.subr.mxu0 0.0
    %377 = vmatpush1.msra.mxu0 %v141
    %378 = vmatprep.subr.mxu0 0.0
    %379 = vmatpush1.msra.mxu0 %v142
    %380 = vmatprep.subr.mxu0 0.0
    %381 = vmatpush1.msra.mxu0 %v143
    %382 = vmatprep.subr.mxu0 0.0
    %383 = vmatpush1.msra.mxu0 %v144
    %384 = vmatprep.subr.mxu0 0.0
    %385 = vmatpush1.msra.mxu0 %v145
    %386 = vmatprep.subr.mxu0 0.0
    %387 = vmatpush1.msra.mxu0 %v146
    %388 = vmatprep.subr.mxu0 0.0
    %389 = vmatpush1.msra.mxu0 %v147
    %390 = vmatprep.subr.mxu0 0.0
    %391 = vmatpush1.msra.mxu0 %v148
    %392 = vmatprep.subr.mxu0 0.0
    %393 = vmatpush1.msra.mxu0 0.0
    %394 = vmatprep.subr.mxu0 0.0
    %395 = vmatpush1.msra.mxu0 0.0
    %396 = vmatprep.subr.mxu0 0.0
    %397 = vmatpush1.msra.mxu0 0.0
    %398 = vmatprep.subr.mxu0 0.0
    %399 = vmatpush1.msra.mxu0 0.0
    %400 = vmatprep.subr.mxu0 0.0
    %401 = vmatpush1.msra.mxu0 0.0
    %402 = vmatprep.subr.mxu0 0.0
    %403 = vmatpush1.msra.mxu0 0.0
    %404 = vmatprep.subr.mxu0 0.0
    %405 = vmatpush1.msra.mxu0 0.0
    %406 = vmatprep.subr.mxu0 0.0
    %407 = vmatpush1.msra.mxu0 0.0
    %408 = vmatprep.subr.mxu0 0.0
    %409 = vmatpush1.msra.mxu0 0.0
    %410 = vmatprep.subr.mxu0 0.0
    %411 = vmatpush1.msra.mxu0 0.0
    %412 = vmatprep.subr.mxu0 0.0
    %413 = vmatpush1.msra.mxu0 0.0
    %414 = vmatprep.subr.mxu0 0.0
    %415 = vmatpush1.msra.mxu0 0.0
    %416 = vmatprep.subr.mxu0 0.0
    %417 = vmatpush1.msra.mxu0 0.0
    %418 = vmatprep.subr.mxu0 0.0
    %419 = vmatpush1.msra.mxu0 0.0
    %420 = vmatprep.subr.mxu0 0.0
    %421 = vmatpush1.msra.mxu0 0.0
    %422 = vmatprep.subr.mxu0 0.0
    %423 = vmatpush1.msra.mxu0 0.0
    %424 = vmatprep.mubr.f32.mxu0 0.0
    %425 = vmatmul.mubr.f32.gmra.mrb[0].mxu0 %v317
    %v426 = vpop.f32.mrb[0].mxu0
    %v427 = vadd.f32 0.0, %v426
    %v428 = vpop.f32.mrb[0].mxu0
    %429 = vmatprep.mubr.f32.mxu0 0.0
    %430 = vmatmul.mubr.f32.gmra.mrb[0].mxu0 %v318
    %v431 = vpop.f32.mrb[0].mxu0
    %v432 = vadd.f32 0.0, %v431
    %v433 = vpop.f32.mrb[0].mxu0
    %434 = vmatprep.mubr.f32.mxu0 0.0
    %435 = vmatmul.mubr.f32.gmra.mrb[0].mxu0 %v319
    %v436 = vpop.f32.mrb[0].mxu0
    %v437 = vadd.f32 0.0, %v436
    %v438 = vpop.f32.mrb[0].mxu0
    %439 = vmatprep.mubr.f32.mxu0 0.0
    %440 = vmatmul.mubr.f32.gmra.mrb[0].mxu0 %v320
    %v441 = vpop.f32.mrb[0].mxu0
    %v442 = vadd.f32 0.0, %v441
    %v443 = vpop.f32.mrb[0].mxu0
    %444 = vmatprep.mubr.f32.mxu0 0.0
    %445 = vmatmul.mubr.f32.gmra.mrb[0].mxu0 %v321
    %v446 = vpop.f32.mrb[0].mxu0
    %v447 = vadd.f32 0.0, %v446
    %v448 = vpop.f32.mrb[0].mxu0
    %449 = vmatprep.mubr.f32.mxu0 0.0
    %450 = vmatmul.mubr.f32.gmra.mrb[0].mxu0 %v322
    %v451 = vpop.f32.mrb[0].mxu0
    %v452 = vadd.f32 0.0, %v451
    %v453 = vpop.f32.mrb[0].mxu0
    %454 = vdwg.mxu0
    %455 = vmatprep.subr.mxu0 0.0
    %456 = vmatpush1.msra.mxu0 %v149
    %457 = vmatprep.subr.mxu0 0.0
    %458 = vmatpush1.msra.mxu0 %v150
    %459 = vmatprep.subr.mxu0 0.0
    %460 = vmatpush1.msra.mxu0 %v151
    %461 = vmatprep.subr.mxu0 0.0
    %462 = vmatpush1.msra.mxu0 %v152
    %463 = vmatprep.subr.mxu0 0.0
    %464 = vmatpush1.msra.mxu0 %v153
    %465 = vmatprep.subr.mxu0 0.0
    %466 = vmatpush1.msra.mxu0 %v154
    %467 = vmatprep.subr.mxu0 0.0
    %468 = vmatpush1.msra.mxu0 %v155
    %469 = vmatprep.subr.mxu0 0.0
    %470 = vmatpush1.msra.mxu0 %v156
    %471 = vmatprep.subr.mxu0 0.0
    %472 = vmatpush1.msra.mxu0 %v157
    %473 = vmatprep.subr.mxu0 0.0
    %474 = vmatpush1.msra.mxu0 %v158
    %475 = vmatprep.subr.mxu0 0.0
    %476 = vmatpush1.msra.mxu0 %v159
    %477 = vmatprep.subr.mxu0 0.0
    %478 = vmatpush1.msra.mxu0 %v160
    %479 = vmatprep.subr.mxu0 0.0
    %480 = vmatpush1.msra.mxu0 %v161
    %481 = vmatprep.subr.mxu0 0.0
    %482 = vmatpush1.msra.mxu0 %v162
    %483 = vmatprep.subr.mxu0 0.0
    %484 = vmatpush1.msra.mxu0 %v163
    %485 = vmatprep.subr.mxu0 0.0
    %486 = vmatpush1.msra.mxu0 %v164
    %487 = vmatprep.subr.mxu0 0.0
    %488 = vmatpush1.msra.mxu0 0.0
    %489 = vmatprep.subr.mxu0 0.0
    %490 = vmatpush1.msra.mxu0 0.0
    %491 = vmatprep.subr.mxu0 0.0
    %492 = vmatpush1.msra.mxu0 0.0
    %493 = vmatprep.subr.mxu0 0.0
    %494 = vmatpush1.msra.mxu0 0.0
    %495 = vmatprep.subr.mxu0 0.0
    %496 = vmatpush1.msra.mxu0 0.0
    %497 = vmatprep.subr.mxu0 0.0
    %498 = vmatpush1.msra.mxu0 0.0
    %499 = vmatprep.subr.mxu0 0.0
    %500 = vmatpush1.msra.mxu0 0.0
    %501 = vmatprep.subr.mxu0 0.0
    %502 = vmatpush1.msra.mxu0 0.0
    %503 = vmatprep.subr.mxu0 0.0
    %504 = vmatpush1.msra.mxu0 0.0
    %505 = vmatprep.subr.mxu0 0.0
    %506 = vmatpush1.msra.mxu0 0.0
    %507 = vmatprep.subr.mxu0 0.0
    %508 = vmatpush1.msra.mxu0 0.0
    %509 = vmatprep.subr.mxu0 0.0
    %510 = vmatpush1.msra.mxu0 0.0
    %511 = vmatprep.subr.mxu0 0.0
    %512 = vmatpush1.msra.mxu0 0.0
    %513 = vmatprep.subr.mxu0 0.0
    %514 = vmatpush1.msra.mxu0 0.0
    %515 = vmatprep.subr.mxu0 0.0
    %516 = vmatpush1.msra.mxu0 0.0
    %517 = vmatprep.subr.mxu0 0.0
    %518 = vmatpush1.msra.mxu0 0.0
    %519 = vmatprep.mubr.f32.mxu0 0.0
    %520 = vmatmul.mubr.f32.gmra.mrb[0].mxu0 %v127
    %v521 = vpop.f32.mrb[0].mxu0
    %v522 = vadd.f32 %v427, %v521
    %v523 = vpop.f32.mrb[0].mxu0
    %524 = vmatprep.mubr.f32.mxu0 0.0
    %525 = vmatmul.mubr.f32.gmra.mrb[0].mxu0 %v128
    %v526 = vpop.f32.mrb[0].mxu0
    %v527 = vadd.f32 %v432, %v526
    %v528 = vpop.f32.mrb[0].mxu0
    %529 = vmatprep.mubr.f32.mxu0 0.0
    %530 = vmatmul.mubr.f32.gmra.mrb[0].mxu0 %v129
    %v531 = vpop.f32.mrb[0].mxu0
    %v532 = vadd.f32 %v437, %v531
    %v533 = vpop.f32.mrb[0].mxu0
    %534 = vmatprep.mubr.f32.mxu0 0.0
    %535 = vmatmul.mubr.f32.gmra.mrb[0].mxu0 %v130
    %v536 = vpop.f32.mrb[0].mxu0
    %v537 = vadd.f32 %v442, %v536
    %v538 = vpop.f32.mrb[0].mxu0
    %539 = vmatprep.mubr.f32.mxu0 0.0
    %540 = vmatmul.mubr.f32.gmra.mrb[0].mxu0 %v131
    %v541 = vpop.f32.mrb[0].mxu0
    %v542 = vadd.f32 %v447, %v541
    %v543 = vpop.f32.mrb[0].mxu0
    %544 = vmatprep.mubr.f32.mxu0 0.0
    %545 = vmatmul.mubr.f32.gmra.mrb[0].mxu0 %v132
    %v546 = vpop.f32.mrb[0].mxu0
    %v547 = vadd.f32 %v452, %v546
    %v548 = vpop.f32.mrb[0].mxu0
    %549 = vdwg.mxu0
    %550 = vmatprep.subr.mxu0 0.0
    %551 = vmatpush1.msra.mxu0 %v165
    %552 = vmatprep.subr.mxu0 0.0
    %553 = vmatpush1.msra.mxu0 %v166
    %554 = vmatprep.subr.mxu0 0.0
    %555 = vmatpush1.msra.mxu0 %v167
    %556 = vmatprep.subr.mxu0 0.0
    %557 = vmatpush1.msra.mxu0 %v168
    %558 = vmatprep.subr.mxu0 0.0
    %559 = vmatpush1.msra.mxu0 %v169
    %560 = vmatprep.subr.mxu0 0.0
    %561 = vmatpush1.msra.mxu0 %v170
    %562 = vmatprep.subr.mxu0 0.0
    %563 = vmatpush1.msra.mxu0 %v171
    %564 = vmatprep.subr.mxu0 0.0
    %565 = vmatpush1.msra.mxu0 %v172
    %566 = vmatprep.subr.mxu0 0.0
    %567 = vmatpush1.msra.mxu0 %v173
    %568 = vmatprep.subr.mxu0 0.0
    %569 = vmatpush1.msra.mxu0 %v174
    %570 = vmatprep.subr.mxu0 0.0
    %571 = vmatpush1.msra.mxu0 %v175
    %572 = vmatprep.subr.mxu0 0.0
    %573 = vmatpush1.msra.mxu0 %v176
    %574 = vmatprep.subr.mxu0 0.0
    %575 = vmatpush1.msra.mxu0 %v177
    %576 = vmatprep.subr.mxu0 0.0
    %577 = vmatpush1.msra.mxu0 %v178
    %578 = vmatprep.subr.mxu0 0.0
    %579 = vmatpush1.msra.mxu0 %v179
    %580 = vmatprep.subr.mxu0 0.0
    %581 = vmatpush1.msra.mxu0 %v180
    %582 = vmatprep.subr.mxu0 0.0
    %583 = vmatpush1.msra.mxu0 0.0
    %584 = vmatprep.subr.mxu0 0.0
    %585 = vmatpush1.msra.mxu0 0.0
    %586 = vmatprep.subr.mxu0 0.0
    %587 = vmatpush1.msra.mxu0 0.0
    %588 = vmatprep.subr.mxu0 0.0
    %589 = vmatpush1.msra.mxu0 0.0
    %590 = vmatprep.subr.mxu0 0.0
    %591 = vmatpush1.msra.mxu0 0.0
    %592 = vmatprep.subr.mxu0 0.0
    %593 = vmatpush1.msra.mxu0 0.0
    %594 = vmatprep.subr.mxu0 0.0
    %595 = vmatpush1.msra.mxu0 0.0
    %596 = vmatprep.subr.mxu0 0.0
    %597 = vmatpush1.msra.mxu0 0.0
    %598 = vmatprep.subr.mxu0 0.0
    %599 = vmatpush1.msra.mxu0 0.0
    %600 = vmatprep.subr.mxu0 0.0
    %601 = vmatpush1.msra.mxu0 0.0
    %602 = vmatprep.subr.mxu0 0.0
    %603 = vmatpush1.msra.mxu0 0.0
    %604 = vmatprep.subr.mxu0 0.0
    %605 = vmatpush1.msra.mxu0 0.0
    %606 = vmatprep.subr.mxu0 0.0
    %607 = vmatpush1.msra.mxu0 0.0
    %608 = vmatprep.subr.mxu0 0.0
    %609 = vmatpush1.msra.mxu0 0.0
    %610 = vmatprep.subr.mxu0 0.0
    %611 = vmatpush1.msra.mxu0 0.0
    %612 = vmatprep.subr.mxu0 0.0
    %613 = vmatpush1.msra.mxu0 0.0
    %614 = vmatprep.mubr.f32.mxu0 0.0
    %615 = vmatmul.mubr.f32.gmra.mrb[0].mxu0 %v354
    %v616 = vpop.f32.mrb[0].mxu0
    %v617 = vadd.f32 0.0, %v616
    %v618 = vpop.f32.mrb[0].mxu0
    %619 = vmatprep.mubr.f32.mxu0 0.0
    %620 = vmatmul.mubr.f32.gmra.mrb[0].mxu0 %v355
    %v621 = vpop.f32.mrb[0].mxu0
    %v622 = vadd.f32 0.0, %v621
    %v623 = vpop.f32.mrb[0].mxu0
    %624 = vmatprep.mubr.f32.mxu0 0.0
    %625 = vmatmul.mubr.f32.gmra.mrb[0].mxu0 %v356
    %v626 = vpop.f32.mrb[0].mxu0
    %v627 = vadd.f32 0.0, %v626
    %v628 = vpop.f32.mrb[0].mxu0
    %629 = vmatprep.mubr.f32.mxu0 0.0
    %630 = vmatmul.mubr.f32.gmra.mrb[0].mxu0 %v357
    %v631 = vpop.f32.mrb[0].mxu0
    %v632 = vadd.f32 0.0, %v631
    %v633 = vpop.f32.mrb[0].mxu0
    %634 = vmatprep.mubr.f32.mxu0 0.0
    %635 = vmatmul.mubr.f32.gmra.mrb[0].mxu0 %v358
    %v636 = vpop.f32.mrb[0].mxu0
    %v637 = vadd.f32 0.0, %v636
    %v638 = vpop.f32.mrb[0].mxu0
    %639 = vmatprep.mubr.f32.mxu0 0.0
    %640 = vmatmul.mubr.f32.gmra.mrb[0].mxu0 %v359
    %v641 = vpop.f32.mrb[0].mxu0
    %v642 = vadd.f32 0.0, %v641
    %v643 = vpop.f32.mrb[0].mxu0
    %644 = vdwg.mxu0
    %v645 = vadd.f32 %v522, %v617
    %v646 = vadd.f32 %v527, %v622
    %v647 = vadd.f32 %v532, %v627
    %v648 = vadd.f32 %v537, %v632
    %v649 = vadd.f32 %v542, %v637
    %v650 = vadd.f32 %v547, %v642
    %v651 = vadd.f32 %v645, %v646
    %v652 = vadd.f32 %v651, %v647
    %v653 = vadd.f32 %v652, %v648
    %v654 = vadd.f32 %v653, %v649
    %v655 = vadd.f32 %v654, %v650
    %v656 = vrot.slane %v655, 4
    %v657 = vadd.f32 %v655, %v656
    %v658 = vrot.slane %v657, 2
    %v659 = vadd.f32 %v657, %v658
    %v660 = vrot.slane %v659, 1
    %v661 = vadd.f32 %v659, %v660
    %v662 = vmul.f32 %v661, 0.020833334
    %v663 = vmul.f32 %v645, %v645
    %v664 = vmul.f32 %v646, %v646
    %v665 = vmul.f32 %v647, %v647
    %v666 = vmul.f32 %v648, %v648
    %v667 = vmul.f32 %v649, %v649
    %v668 = vmul.f32 %v650, %v650
    %v669 = vadd.f32 %v663, %v664
    %v670 = vadd.f32 %v669, %v665
    %v671 = vadd.f32 %v670, %v666
    %v672 = vadd.f32 %v671, %v667
    %v673 = vadd.f32 %v672, %v668
    %v674 = vrot.slane %v673, 4
    %v675 = vadd.f32 %v673, %v674
    %v676 = vrot.slane %v675, 2
    %v677 = vadd.f32 %v675, %v676
    %v678 = vrot.slane %v677, 1
    %v679 = vadd.f32 %v677, %v678
    %v680 = vmul.f32 %v679, 0.020833334
    %v681 = vmul.f32 %v662, %v662
    %v682 = vsub.f32 %v680, %v681
    %v683 = vmax.f32 %v682, 0.0
    %v684 = vsub.f32 %v645, %v662
    %v685 = vsub.f32 %v646, %v662
    %v686 = vsub.f32 %v647, %v662
    %v687 = vsub.f32 %v648, %v662
    %v688 = vsub.f32 %v649, %v662
    %v689 = vsub.f32 %v650, %v662
    %v690 = vadd.f32 %v683, 1e-05
    %v691 = vrsqrt.pop %v690
    %v692 = vmul.f32 %v181, %v691
    %v694 = vlaneseq
    %v695 = vshrl.u32 %v694, 7
    %v696 = vsub.s32 0, %v695
    %v697 = vrot.slane %v692, %v696
    %v699 = vmul.f32 %v684, %v697
    %v700 = vmul.f32 %v685, %v697
    %v701 = vmul.f32 %v686, %v697
    %v702 = vmul.f32 %v687, %v697
    %v703 = vmul.f32 %v688, %v697
    %v704 = vmul.f32 %v689, %v697
    %v706 = vlaneseq
    %v707 = vshrl.u32 %v706, 7
    %v708 = vsub.s32 0, %v707
    %v709 = vrot.slane %v182, %v708
    %v711 = vadd.f32 %v699, %v709
    %v712 = vadd.f32 %v700, %v709
    %v713 = vadd.f32 %v701, %v709
    %v714 = vadd.f32 %v702, %v709
    %v715 = vadd.f32 %v703, %v709
    %v716 = vadd.f32 %v704, %v709
    %v717 = vmax.f32 %v711, 0.0
    %v718 = vmax.f32 %v712, 0.0
    %v719 = vmax.f32 %v713, 0.0
    %v720 = vmax.f32 %v714, 0.0
    %v721 = vmax.f32 %v715, 0.0
    %v722 = vmax.f32 %v716, 0.0
    %v724 = vunpack.c.l.s4 1966171168
    %v725 = vunpack.c.0.s8 %v724
    %v726 = vlaneseq
    %v727 = vshrl.u32 %v726, 7
    %v728 = vsub.s32 %v725, %v727
    %v729 = vrot.slane %v717, %v728
    %v731 = vunpack.c.l.s4 1966171168
    %v732 = vunpack.c.0.s8 %v731
    %v733 = vlaneseq
    %v734 = vshrl.u32 %v733, 7
    %v735 = vsub.s32 %v732, %v734
    %v736 = vrot.slane %v718, %v735
    %v738 = vunpack.c.l.s4 1966171168
    %v739 = vunpack.c.0.s8 %v738
    %v740 = vlaneseq
    %v741 = vshrl.u32 %v740, 7
    %v742 = vsub.s32 %v739, %v741
    %v743 = vrot.slane %v719, %v742
    %v745 = vunpack.c.l.s4 1966171168
    %v746 = vunpack.c.0.s8 %v745
    %v747 = vlaneseq
    %v748 = vshrl.u32 %v747, 7
    %v749 = vsub.s32 %v746, %v748
    %v750 = vrot.slane %v720, %v749
    %v752 = vunpack.c.l.s4 1966171168
    %v753 = vunpack.c.0.s8 %v752
    %v754 = vlaneseq
    %v755 = vshrl.u32 %v754, 7
    %v756 = vsub.s32 %v753, %v755
    %v757 = vrot.slane %v721, %v756
    %v759 = vunpack.c.l.s4 1966171168
    %v760 = vunpack.c.0.s8 %v759
    %v761 = vlaneseq
    %v762 = vshrl.u32 %v761, 7
    %v763 = vsub.s32 %v760, %v762
    %v764 = vrot.slane %v722, %v763
    %v771 = vrot.slane %v729, 4
    %v772 = vrot.slane %v736, 4
    %v773 = vrot.slane %v743, 4
    %v774 = vrot.slane %v750, 4
    %v775 = vrot.slane %v757, 4
    %v776 = vrot.slane %v764, 4
    %v783 = vmax.f32 %v729, %v771
    %v784 = vmax.f32 %v736, %v772
    %v785 = vmax.f32 %v743, %v773
    %v786 = vmax.f32 %v750, %v774
    %v787 = vmax.f32 %v757, %v775
    %v788 = vmax.f32 %v764, %v776
    %v789 = vld [vmem:[#allocation7] sm:$0xff]
    %v790 = vld [vmem:[#allocation7 + $0x8] sm:$0xff]
    %v791 = vld [vmem:[#allocation7 + $0x10] sm:$0xff]
    %v792 = vld [vmem:[#allocation7 + $0x18] sm:$0xff]
    %v793 = vld [vmem:[#allocation7 + $0x20] sm:$0xff]
    %v794 = vld [vmem:[#allocation7 + $0x28] sm:$0xff]
    %v795 = vld [vmem:[#allocation7 + $0x30] sm:$0xff]
    %v796 = vld [vmem:[#allocation7 + $0x38] sm:$0xff]
    %v797 = vld [vmem:[#allocation7 + $0x40] sm:$0xff]
    %v798 = vld [vmem:[#allocation7 + $0x48] sm:$0xff]
    %v799 = vld [vmem:[#allocation7 + $0x50] sm:$0xff]
    %v800 = vld [vmem:[#allocation7 + $0x58] sm:$0xff]
    %v801 = vld [vmem:[#allocation7 + $0x60] sm:$0xff]
    %v802 = vld [vmem:[#allocation7 + $0x68] sm:$0xff]
    %v803 = vld [vmem:[#allocation7 + $0x70] sm:$0xff]
    %v804 = vld [vmem:[#allocation7 + $0x78] sm:$0xff]
    %v805 = vld [vmem:[#allocation8] sm:$0xff]
    %v806 = vld [vmem:[#allocation8 + $0x8] sm:$0xff]
    %v807 = vld [vmem:[#allocation8 + $0x10] sm:$0xff]
    %v808 = vld [vmem:[#allocation8 + $0x18] sm:$0xff]
    %v809 = vld [vmem:[#allocation8 + $0x20] sm:$0xff]
    %v810 = vld [vmem:[#allocation8 + $0x28] sm:$0xff]
    %v811 = vld [vmem:[#allocation8 + $0x30] sm:$0xff]
    %v812 = vld [vmem:[#allocation8 + $0x38] sm:$0xff]
    %v813 = vld [vmem:[#allocation8 + $0x40] sm:$0xff]
    %v814 = vld [vmem:[#allocation8 + $0x48] sm:$0xff]
    %v815 = vld [vmem:[#allocation8 + $0x50] sm:$0xff]
    %v816 = vld [vmem:[#allocation8 + $0x58] sm:$0xff]
    %v817 = vld [vmem:[#allocation8 + $0x60] sm:$0xff]
    %v818 = vld [vmem:[#allocation8 + $0x68] sm:$0xff]
    %v819 = vld [vmem:[#allocation8 + $0x70] sm:$0xff]
    %v820 = vld [vmem:[#allocation8 + $0x78] sm:$0xff]
    %v821 = vld [vmem:[#allocation10] sm:$0xff]
    %v822 = vld [vmem:[#allocation10 + $0x8] sm:$0xff]
    %v823 = vld [vmem:[#allocation10 + $0x10] sm:$0xff]
    %v824 = vld [vmem:[#allocation10 + $0x18] sm:$0xff]
    %v825 = vld [vmem:[#allocation10 + $0x20] sm:$0xff]
    %v826 = vld [vmem:[#allocation10 + $0x28] sm:$0xff]
    %v827 = vld [vmem:[#allocation10 + $0x30] sm:$0xff]
    %v828 = vld [vmem:[#allocation10 + $0x38] sm:$0xff]
    %v829 = vld [vmem:[#allocation10 + $0x40] sm:$0xff]
    %v830 = vld [vmem:[#allocation10 + $0x48] sm:$0xff]
    %v831 = vld [vmem:[#allocation10 + $0x50] sm:$0xff]
    %v832 = vld [vmem:[#allocation10 + $0x58] sm:$0xff]
    %v833 = vld [vmem:[#allocation10 + $0x60] sm:$0xff]
    %v834 = vld [vmem:[#allocation10 + $0x68] sm:$0xff]
    %v835 = vld [vmem:[#allocation10 + $0x70] sm:$0xff]
    %v836 = vld [vmem:[#allocation10 + $0x78] sm:$0xff]
    %v837 = vld [vmem:[%s9] sm:$0x1]
    %v838 = vld [vmem:[%s10] sm:$0x1]
    %vm839 = vcmp.lt.s32.totalorder %v184, 0
    %v840 = vsub.s32 0, %v184
    %v841 = vsel %vm839, %v840, %v184
    %v842 = vmul.u32.u64.compose %v841, 2863311531
    %v843 = vextract.low.u32 %v842
    %v844 = vextract.high.u32 %v842
    %v845 = vshrl.u32 %v844, 3
    %v846 = vmul.u32 %v845, 12
    %v847 = vsub.s32 %v841, %v846
    %v848 = vsub.s32 0, %v847
    %v849 = vsel %vm839, %v848, %v847
    %vm850 = vcmp.lt.s32.totalorder %v185, 0
    %v851 = vsub.s32 0, %v185
    %v852 = vsel %vm850, %v851, %v185
    %v853 = vmul.u32.u64.compose %v852, 2863311531
    %v854 = vextract.low.u32 %v853
    %v855 = vextract.high.u32 %v853
    %v856 = vshrl.u32 %v855, 3
    %v857 = vmul.u32 %v856, 12
    %v858 = vsub.s32 %v852, %v857
    %v859 = vsub.s32 0, %v858
    %v860 = vsel %vm850, %v859, %v858
    %vm861 = vcmp.lt.s32.totalorder %v186, 0
    %v862 = vsub.s32 0, %v186
    %v863 = vsel %vm861, %v862, %v186
    %v864 = vmul.u32.u64.compose %v863, 2863311531
    %v865 = vextract.low.u32 %v864
    %v866 = vextract.high.u32 %v864
    %v867 = vshrl.u32 %v866, 3
    %v868 = vmul.u32 %v867, 12
    %v869 = vsub.s32 %v863, %v868
    %v870 = vsub.s32 0, %v869
    %v871 = vsel %vm861, %v870, %v869
    %vm872 = vcmp.ne.s32.totalorder %v849, 0
    %vm873 = vcmp.ne.s32.totalorder %v860, 0
    %vm874 = vcmp.ne.s32.totalorder %v871, 0
    %vm875 = vcmp.lt.s32.totalorder %v849, 0
    %vm876 = vcmp.lt.s32.totalorder %v860, 0
    %vm877 = vcmp.lt.s32.totalorder %v871, 0
    %vm878 = vmand %vm875, %vm872
    %vm879 = vmand %vm876, %vm873
    %vm880 = vmand %vm877, %vm874
    %v881 = vadd.s32 %v849, 12
    %v882 = vadd.s32 %v860, 12
    %v883 = vadd.s32 %v871, 12
    %v884 = vsel %vm878, %v881, %v849
    %v885 = vsel %vm879, %v882, %v860
    %v886 = vsel %vm880, %v883, %v871
    %vm887 = vcmp.eq.s32.totalorder %v884, 0
    %vm888 = vcmp.eq.s32.totalorder %v885, 0
    %vm889 = vcmp.eq.s32.totalorder %v886, 0
    %v896 = vcombine.low %v783, %v784
    %v897 = vcombine.low %v785, %v786
    %v898 = vcombine.low %v787, %v788
    %v902 = vrot.slane %v896, 7
    %v903 = vrot.slane %v897, 7
    %v904 = vrot.slane %v898, 7
    %v905 = vsel %vm298, %v903, %v904
    %v906 = vsel %vm298, %v902, %v903
    %v907 = vsel %vm298, %v904, %v902
    %v908 = vsel %vm887, 1, 0
    %v909 = vsel %vm888, 1, 0
    %v910 = vsel %vm889, 1, 0
    %vm911 = vcmp.eq.s32.totalorder %v908, 1
    %vm912 = vcmp.eq.s32.totalorder %v909, 1
    %vm913 = vcmp.eq.s32.totalorder %v910, 1
    %v914 = vsel %vm911, 0.0, %v907
    %v915 = vsel %vm912, 0.0, %v906
    %v916 = vsel %vm913, 0.0, %v905
    %vm917 = vcmp.eq.s32.totalorder %v884, 11
    %vm918 = vcmp.eq.s32.totalorder %v885, 11
    %vm919 = vcmp.eq.s32.totalorder %v886, 11
    %v920 = vrot.slane %v896, 1
    %v921 = vrot.slane %v897, 1
    %v922 = vrot.slane %v898, 1
    %v923 = vsel %vm335, %v921, %v922
    %v924 = vsel %vm335, %v920, %v921
    %v925 = vsel %vm335, %v922, %v920
    %v926 = vsel %vm917, 1, 0
    %v927 = vsel %vm918, 1, 0
    %v928 = vsel %vm919, 1, 0
    %vm929 = vcmp.eq.s32.totalorder %v926, 1
    %vm930 = vcmp.eq.s32.totalorder %v927, 1
    %vm931 = vcmp.eq.s32.totalorder %v928, 1
    %v932 = vsel %vm929, 0.0, %v924
    %v933 = vsel %vm930, 0.0, %v923
    %v934 = vsel %vm931, 0.0, %v925
    %935 = vmatprep.subr.mxu0 0.0
    %936 = vmatpush1.msra.mxu0 %v789
    %937 = vmatprep.subr.mxu0 0.0
    %938 = vmatpush1.msra.mxu0 %v790
    %939 = vmatprep.subr.mxu0 0.0
    %940 = vmatpush1.msra.mxu0 %v791
    %941 = vmatprep.subr.mxu0 0.0
    %942 = vmatpush1.msra.mxu0 %v792
    %943 = vmatprep.subr.mxu0 0.0
    %944 = vmatpush1.msra.mxu0 %v793
    %945 = vmatprep.subr.mxu0 0.0
    %946 = vmatpush1.msra.mxu0 %v794
    %947 = vmatprep.subr.mxu0 0.0
    %948 = vmatpush1.msra.mxu0 %v795
    %949 = vmatprep.subr.mxu0 0.0
    %950 = vmatpush1.msra.mxu0 %v796
    %951 = vmatprep.subr.mxu0 0.0
    %952 = vmatpush1.msra.mxu0 %v797
    %953 = vmatprep.subr.mxu0 0.0
    %954 = vmatpush1.msra.mxu0 %v798
    %955 = vmatprep.subr.mxu0 0.0
    %956 = vmatpush1.msra.mxu0 %v799
    %957 = vmatprep.subr.mxu0 0.0
    %958 = vmatpush1.msra.mxu0 %v800
    %959 = vmatprep.subr.mxu0 0.0
    %960 = vmatpush1.msra.mxu0 %v801
    %961 = vmatprep.subr.mxu0 0.0
    %962 = vmatpush1.msra.mxu0 %v802
    %963 = vmatprep.subr.mxu0 0.0
    %964 = vmatpush1.msra.mxu0 %v803
    %965 = vmatprep.subr.mxu0 0.0
    %966 = vmatpush1.msra.mxu0 %v804
    %967 = vmatprep.subr.mxu0 0.0
    %968 = vmatpush1.msra.mxu0 0.0
    %969 = vmatprep.subr.mxu0 0.0
    %970 = vmatpush1.msra.mxu0 0.0
    %971 = vmatprep.subr.mxu0 0.0
    %972 = vmatpush1.msra.mxu0 0.0
    %973 = vmatprep.subr.mxu0 0.0
    %974 = vmatpush1.msra.mxu0 0.0
    %975 = vmatprep.subr.mxu0 0.0
    %976 = vmatpush1.msra.mxu0 0.0
    %977 = vmatprep.subr.mxu0 0.0
    %978 = vmatpush1.msra.mxu0 0.0
    %979 = vmatprep.subr.mxu0 0.0
    %980 = vmatpush1.msra.mxu0 0.0
    %981 = vmatprep.subr.mxu0 0.0
    %982 = vmatpush1.msra.mxu0 0.0
    %983 = vmatprep.subr.mxu0 0.0
    %984 = vmatpush1.msra.mxu0 0.0
    %985 = vmatprep.subr.mxu0 0.0
    %986 = vmatpush1.msra.mxu0 0.0
    %987 = vmatprep.subr.mxu0 0.0
    %988 = vmatpush1.msra.mxu0 0.0
    %989 = vmatprep.subr.mxu0 0.0
    %990 = vmatpush1.msra.mxu0 0.0
    %991 = vmatprep.subr.mxu0 0.0
    %992 = vmatpush1.msra.mxu0 0.0
    %993 = vmatprep.subr.mxu0 0.0
    %994 = vmatpush1.msra.mxu0 0.0
    %995 = vmatprep.subr.mxu0 0.0
    %996 = vmatpush1.msra.mxu0 0.0
    %997 = vmatprep.subr.mxu0 0.0
    %998 = vmatpush1.msra.mxu0 0.0
    %999 = vmatprep.mubr.f32.mxu0 0.0
    %1000 = vmatmul.mubr.f32.gmra.mrb[0].mxu0 %v914
    %v1001 = vpop.f32.mrb[0].mxu0
    %v1002 = vadd.f32 0.0, %v1001
    %v1003 = vpop.f32.mrb[0].mxu0
    %1004 = vmatprep.mubr.f32.mxu0 0.0
    %1005 = vmatmul.mubr.f32.gmra.mrb[0].mxu0 %v915
    %v1006 = vpop.f32.mrb[0].mxu0
    %v1007 = vadd.f32 0.0, %v1006
    %v1008 = vpop.f32.mrb[0].mxu0
    %1009 = vmatprep.mubr.f32.mxu0 0.0
    %1010 = vmatmul.mubr.f32.gmra.mrb[0].mxu0 %v916
    %v1011 = vpop.f32.mrb[0].mxu0
    %v1012 = vadd.f32 0.0, %v1011
    %v1013 = vpop.f32.mrb[0].mxu0
    %1014 = vdwg.mxu0
    %1015 = vmatprep.subr.mxu0 0.0
    %1016 = vmatpush1.msra.mxu0 %v805
    %1017 = vmatprep.subr.mxu0 0.0
    %1018 = vmatpush1.msra.mxu0 %v806
    %1019 = vmatprep.subr.mxu0 0.0
    %1020 = vmatpush1.msra.mxu0 %v807
    %1021 = vmatprep.subr.mxu0 0.0
    %1022 = vmatpush1.msra.mxu0 %v808
    %1023 = vmatprep.subr.mxu0 0.0
    %1024 = vmatpush1.msra.mxu0 %v809
    %1025 = vmatprep.subr.mxu0 0.0
    %1026 = vmatpush1.msra.mxu0 %v810
    %1027 = vmatprep.subr.mxu0 0.0
    %1028 = vmatpush1.msra.mxu0 %v811
    %1029 = vmatprep.subr.mxu0 0.0
    %1030 = vmatpush1.msra.mxu0 %v812
    %1031 = vmatprep.subr.mxu0 0.0
    %1032 = vmatpush1.msra.mxu0 %v813
    %1033 = vmatprep.subr.mxu0 0.0
    %1034 = vmatpush1.msra.mxu0 %v814
    %1035 = vmatprep.subr.mxu0 0.0
    %1036 = vmatpush1.msra.mxu0 %v815
    %1037 = vmatprep.subr.mxu0 0.0
    %1038 = vmatpush1.msra.mxu0 %v816
    %1039 = vmatprep.subr.mxu0 0.0
    %1040 = vmatpush1.msra.mxu0 %v817
    %1041 = vmatprep.subr.mxu0 0.0
    %1042 = vmatpush1.msra.mxu0 %v818
    %1043 = vmatprep.subr.mxu0 0.0
    %1044 = vmatpush1.msra.mxu0 %v819
    %1045 = vmatprep.subr.mxu0 0.0
    %1046 = vmatpush1.msra.mxu0 %v820
    %1047 = vmatprep.subr.mxu0 0.0
    %1048 = vmatpush1.msra.mxu0 0.0
    %1049 = vmatprep.subr.mxu0 0.0
    %1050 = vmatpush1.msra.mxu0 0.0
    %1051 = vmatprep.subr.mxu0 0.0
    %1052 = vmatpush1.msra.mxu0 0.0
    %1053 = vmatprep.subr.mxu0 0.0
    %1054 = vmatpush1.msra.mxu0 0.0
    %1055 = vmatprep.subr.mxu0 0.0
    %1056 = vmatpush1.msra.mxu0 0.0
    %1057 = vmatprep.subr.mxu0 0.0
    %1058 = vmatpush1.msra.mxu0 0.0
    %1059 = vmatprep.subr.mxu0 0.0
    %1060 = vmatpush1.msra.mxu0 0.0
    %1061 = vmatprep.subr.mxu0 0.0
    %1062 = vmatpush1.msra.mxu0 0.0
    %1063 = vmatprep.subr.mxu0 0.0
    %1064 = vmatpush1.msra.mxu0 0.0
    %1065 = vmatprep.subr.mxu0 0.0
    %1066 = vmatpush1.msra.mxu0 0.0
    %1067 = vmatprep.subr.mxu0 0.0
    %1068 = vmatpush1.msra.mxu0 0.0
    %1069 = vmatprep.subr.mxu0 0.0
    %1070 = vmatpush1.msra.mxu0 0.0
    %1071 = vmatprep.subr.mxu0 0.0
    %1072 = vmatpush1.msra.mxu0 0.0
    %1073 = vmatprep.subr.mxu0 0.0
    %1074 = vmatpush1.msra.mxu0 0.0
    %1075 = vmatprep.subr.mxu0 0.0
    %1076 = vmatpush1.msra.mxu0 0.0
    %1077 = vmatprep.subr.mxu0 0.0
    %1078 = vmatpush1.msra.mxu0 0.0
    %1079 = vmatprep.mubr.f32.mxu0 0.0
    %1080 = vmatmul.mubr.f32.gmra.mrb[0].mxu0 %v896
    %v1081 = vpop.f32.mrb[0].mxu0
    %v1082 = vadd.f32 %v1002, %v1081
    %v1083 = vpop.f32.mrb[0].mxu0
    %1084 = vmatprep.mubr.f32.mxu0 0.0
    %1085 = vmatmul.mubr.f32.gmra.mrb[0].mxu0 %v897
    %v1086 = vpop.f32.mrb[0].mxu0
    %v1087 = vadd.f32 %v1007, %v1086
    %v1088 = vpop.f32.mrb[0].mxu0
    %1089 = vmatprep.mubr.f32.mxu0 0.0
    %1090 = vmatmul.mubr.f32.gmra.mrb[0].mxu0 %v898
    %v1091 = vpop.f32.mrb[0].mxu0
    %v1092 = vadd.f32 %v1012, %v1091
    %v1093 = vpop.f32.mrb[0].mxu0
    %1094 = vdwg.mxu0
    %1095 = vmatprep.subr.mxu0 0.0
    %1096 = vmatpush1.msra.mxu0 %v821
    %1097 = vmatprep.subr.mxu0 0.0
    %1098 = vmatpush1.msra.mxu0 %v822
    %1099 = vmatprep.subr.mxu0 0.0
    %1100 = vmatpush1.msra.mxu0 %v823
    %1101 = vmatprep.subr.mxu0 0.0
    %1102 = vmatpush1.msra.mxu0 %v824
    %1103 = vmatprep.subr.mxu0 0.0
    %1104 = vmatpush1.msra.mxu0 %v825
    %1105 = vmatprep.subr.mxu0 0.0
    %1106 = vmatpush1.msra.mxu0 %v826
    %1107 = vmatprep.subr.mxu0 0.0
    %1108 = vmatpush1.msra.mxu0 %v827
    %1109 = vmatprep.subr.mxu0 0.0
    %1110 = vmatpush1.msra.mxu0 %v828
    %1111 = vmatprep.subr.mxu0 0.0
    %1112 = vmatpush1.msra.mxu0 %v829
    %1113 = vmatprep.subr.mxu0 0.0
    %1114 = vmatpush1.msra.mxu0 %v830
    %1115 = vmatprep.subr.mxu0 0.0
    %1116 = vmatpush1.msra.mxu0 %v831
    %1117 = vmatprep.subr.mxu0 0.0
    %1118 = vmatpush1.msra.mxu0 %v832
    %1119 = vmatprep.subr.mxu0 0.0
    %1120 = vmatpush1.msra.mxu0 %v833
    %1121 = vmatprep.subr.mxu0 0.0
    %1122 = vmatpush1.msra.mxu0 %v834
    %1123 = vmatprep.subr.mxu0 0.0
    %1124 = vmatpush1.msra.mxu0 %v835
    %1125 = vmatprep.subr.mxu0 0.0
    %1126 = vmatpush1.msra.mxu0 %v836
    %1127 = vmatprep.subr.mxu0 0.0
    %1128 = vmatpush1.msra.mxu0 0.0
    %1129 = vmatprep.subr.mxu0 0.0
    %1130 = vmatpush1.msra.mxu0 0.0
    %1131 = vmatprep.subr.mxu0 0.0
    %1132 = vmatpush1.msra.mxu0 0.0
    %1133 = vmatprep.subr.mxu0 0.0
    %1134 = vmatpush1.msra.mxu0 0.0
    %1135 = vmatprep.subr.mxu0 0.0
    %1136 = vmatpush1.msra.mxu0 0.0
    %1137 = vmatprep.subr.mxu0 0.0
    %1138 = vmatpush1.msra.mxu0 0.0
    %1139 = vmatprep.subr.mxu0 0.0
    %1140 = vmatpush1.msra.mxu0 0.0
    %1141 = vmatprep.subr.mxu0 0.0
    %1142 = vmatpush1.msra.mxu0 0.0
    %1143 = vmatprep.subr.mxu0 0.0
    %1144 = vmatpush1.msra.mxu0 0.0
    %1145 = vmatprep.subr.mxu0 0.0
    %1146 = vmatpush1.msra.mxu0 0.0
    %1147 = vmatprep.subr.mxu0 0.0
    %1148 = vmatpush1.msra.mxu0 0.0
    %1149 = vmatprep.subr.mxu0 0.0
    %1150 = vmatpush1.msra.mxu0 0.0
    %1151 = vmatprep.subr.mxu0 0.0
    %1152 = vmatpush1.msra.mxu0 0.0
    %1153 = vmatprep.subr.mxu0 0.0
    %1154 = vmatpush1.msra.mxu0 0.0
    %1155 = vmatprep.subr.mxu0 0.0
    %1156 = vmatpush1.msra.mxu0 0.0
    %1157 = vmatprep.subr.mxu0 0.0
    %1158 = vmatpush1.msra.mxu0 0.0
    %1159 = vmatprep.mubr.f32.mxu0 0.0
    %1160 = vmatmul.mubr.f32.gmra.mrb[0].mxu0 %v932
    %v1161 = vpop.f32.mrb[0].mxu0
    %v1162 = vadd.f32 0.0, %v1161
    %v1163 = vpop.f32.mrb[0].mxu0
    %1164 = vmatprep.mubr.f32.mxu0 0.0
    %1165 = vmatmul.mubr.f32.gmra.mrb[0].mxu0 %v933
    %v1166 = vpop.f32.mrb[0].mxu0
    %v1167 = vadd.f32 0.0, %v1166
    %v1168 = vpop.f32.mrb[0].mxu0
    %1169 = vmatprep.mubr.f32.mxu0 0.0
    %1170 = vmatmul.mubr.f32.gmra.mrb[0].mxu0 %v934
    %v1171 = vpop.f32.mrb[0].mxu0
    %v1172 = vadd.f32 0.0, %v1171
    %v1173 = vpop.f32.mrb[0].mxu0
    %1174 = vdwg.mxu0
    %v1175 = vadd.f32 %v1082, %v1162
    %v1176 = vadd.f32 %v1087, %v1167
    %v1177 = vadd.f32 %v1092, %v1172
    %v1178 = vadd.f32 %v1175, %v1176
    %v1179 = vadd.f32 %v1178, %v1177
    %v1180 = vrot.slane %v1179, 4
    %v1181 = vadd.f32 %v1179, %v1180
    %v1182 = vrot.slane %v1181, 2
    %v1183 = vadd.f32 %v1181, %v1182
    %v1184 = vrot.slane %v1183, 1
    %v1185 = vadd.f32 %v1183, %v1184
    %v1186 = vmul.f32 %v1185, 0.041666668
    %v1187 = vmul.f32 %v1175, %v1175
    %v1188 = vmul.f32 %v1176, %v1176
    %v1189 = vmul.f32 %v1177, %v1177
    %v1190 = vadd.f32 %v1187, %v1188
    %v1191 = vadd.f32 %v1190, %v1189
    %v1192 = vrot.slane %v1191, 4
    %v1193 = vadd.f32 %v1191, %v1192
    %v1194 = vrot.slane %v1193, 2
    %v1195 = vadd.f32 %v1193, %v1194
    %v1196 = vrot.slane %v1195, 1
    %v1197 = vadd.f32 %v1195, %v1196
    %v1198 = vmul.f32 %v1197, 0.041666668
    %v1199 = vmul.f32 %v1186, %v1186
    %v1200 = vsub.f32 %v1198, %v1199
    %v1201 = vmax.f32 %v1200, 0.0
    %v1202 = vsub.f32 %v1175, %v1186
    %v1203 = vsub.f32 %v1176, %v1186
    %v1204 = vsub.f32 %v1177, %v1186
    %v1205 = vadd.f32 %v1201, 1e-05
    %v1206 = vrsqrt.pop %v1205
    %v1207 = vmul.f32 %v837, %v1206
    %v1209 = vlaneseq
    %v1210 = vshrl.u32 %v1209, 7
    %v1211 = vsub.s32 0, %v1210
    %v1212 = vrot.slane %v1207, %v1211
    %v1214 = vmul.f32 %v1202, %v1212
    %v1215 = vmul.f32 %v1203, %v1212
    %v1216 = vmul.f32 %v1204, %v1212
    %v1218 = vlaneseq
    %v1219 = vshrl.u32 %v1218, 7
    %v1220 = vsub.s32 0, %v1219
    %v1221 = vrot.slane %v838, %v1220
    %v1223 = vadd.f32 %v1214, %v1221
    %v1224 = vadd.f32 %v1215, %v1221
    %v1225 = vadd.f32 %v1216, %v1221
    %v1226 = vmax.f32 %v1223, 0.0
    %v1227 = vmax.f32 %v1224, 0.0
    %v1228 = vmax.f32 %v1225, 0.0
    %v1230 = vunpack.c.l.s4 1966171168
    %v1231 = vunpack.c.0.s8 %v1230
    %v1232 = vlaneseq
    %v1233 = vshrl.u32 %v1232, 7
    %v1234 = vsub.s32 %v1231, %v1233
    %v1235 = vrot.slane %v1226, %v1234
    %v1237 = vunpack.c.l.s4 1966171168
    %v1238 = vunpack.c.0.s8 %v1237
    %v1239 = vlaneseq
    %v1240 = vshrl.u32 %v1239, 7
    %v1241 = vsub.s32 %v1238, %v1240
    %v1242 = vrot.slane %v1227, %v1241
    %v1244 = vunpack.c.l.s4 1966171168
    %v1245 = vunpack.c.0.s8 %v1244
    %v1246 = vlaneseq
    %v1247 = vshrl.u32 %v1246, 7
    %v1248 = vsub.s32 %v1245, %v1247
    %v1249 = vrot.slane %v1228, %v1248
    %v1253 = vrot.slane %v1235, 4
    %v1254 = vrot.slane %v1242, 4
    %v1255 = vrot.slane %v1249, 4
    %v1259 = vmax.f32 %v1235, %v1253
    %v1260 = vmax.f32 %v1242, %v1254
    %v1261 = vmax.f32 %v1249, %v1255
    %v1264 = vcombine.low %v1259, %v1260
    %vm1266 = vcmask 1040384
    %v1267 = vsel %vm1266, %v1264, 0.0
    %v1268 = vrot.slane %v1264, 5
    %vm1269 = vcmask 1041409
    %v1270 = vsel %vm1269, %v1268, %v1267
    %v1271 = vrot.slane %v1264, 1
    %v1272 = vsel %vm1266, %v1271, 0.0
    %v1273 = vrot.slane %v1264, 6
    %v1274 = vsel %vm1269, %v1273, %v1272
    %v1275 = vrot.slane %v1264, 2
    %v1276 = vsel %vm1266, %v1275, 0.0
    %v1277 = vrot.slane %v1261, 7
    %v1278 = vsel %vm1269, %v1277, %v1276
    %v1279 = vrot.slane %v1264, 3
    %v1280 = vsel %vm1266, %v1279, 0.0
    %v1281 = vsel %vm1269, %v1261, %v1280
    %v1282 = vrot.slane %v1264, 4
    %v1283 = vsel %vm1266, %v1282, 0.0
    %v1284 = vrot.slane %v1261, 1
    %v1285 = vsel %vm1269, %v1284, %v1283
    %v1286 = vsel %vm1266, %v1268, 0.0
    %v1287 = vrot.slane %v1261, 2
    %v1288 = vsel %vm1269, %v1287, %v1286
    %v1289 = vld [vmem:[#allocation11] sm:$0xff]
    %v1290 = vld [vmem:[#allocation11 + $0x8] sm:$0xff]
    %v1291 = vld [vmem:[#allocation11 + $0x10] sm:$0xff]
    %v1292 = vld [vmem:[#allocation11 + $0x18] sm:$0xff]
    %v1293 = vld [vmem:[#allocation11 + $0x20] sm:$0xff]
    %v1294 = vld [vmem:[#allocation11 + $0x28] sm:$0xff]
    %v1295 = vld [vmem:[#allocation11 + $0x30] sm:$0xff]
    %v1296 = vld [vmem:[#allocation11 + $0x38] sm:$0xff]
    %v1297 = vld [vmem:[#allocation11 + $0x40] sm:$0xff]
    %v1298 = vld [vmem:[#allocation11 + $0x48] sm:$0xff]
    %v1299 = vld [vmem:[#allocation11 + $0x50] sm:$0xff]
    %v1300 = vld [vmem:[#allocation11 + $0x58] sm:$0xff]
    %v1301 = vld [vmem:[#allocation11 + $0x60] sm:$0xff]
    %v1302 = vld [vmem:[#allocation11 + $0x68] sm:$0xff]
    %v1303 = vld [vmem:[#allocation11 + $0x70] sm:$0xff]
    %v1304 = vld [vmem:[#allocation11 + $0x78] sm:$0xff]
    %v1305 = vld [vmem:[#allocation11 + $0x80] sm:$0xff]
    %v1306 = vld [vmem:[#allocation11 + $0x88] sm:$0xff]
    %v1307 = vld [vmem:[#allocation11 + $0x90] sm:$0xff]
    %v1308 = vld [vmem:[#allocation11 + $0x98] sm:$0xff]
    %v1309 = vld [vmem:[#allocation11 + $0xa0] sm:$0xff]
    %v1310 = vld [vmem:[#allocation11 + $0xa8] sm:$0xff]
    %v1311 = vld [vmem:[#allocation11 + $0xb0] sm:$0xff]
    %v1312 = vld [vmem:[#allocation11 + $0xb8] sm:$0xff]
    %v1313 = vld [vmem:[#allocation11 + $0xc0] sm:$0xff]
    %v1314 = vld [vmem:[#allocation11 + $0xc8] sm:$0xff]
    %v1315 = vld [vmem:[#allocation11 + $0xd0] sm:$0xff]
    %v1316 = vld [vmem:[#allocation11 + $0xd8] sm:$0xff]
    %v1317 = vld [vmem:[#allocation11 + $0xe0] sm:$0xff]
    %v1318 = vld [vmem:[#allocation11 + $0xe8] sm:$0xff]
    %v1319 = vld [vmem:[#allocation11 + $0xf0] sm:$0xff]
    %v1320 = vld [vmem:[#allocation11 + $0xf8] sm:$0xff]
    %v1321 = vld [vmem:[#allocation11 + $0x100] sm:$0xff]
    %v1322 = vld [vmem:[#allocation11 + $0x108] sm:$0xff]
    %v1323 = vld [vmem:[#allocation11 + $0x110] sm:$0xff]
    %v1324 = vld [vmem:[#allocation11 + $0x118] sm:$0xff]
    %v1325 = vld [vmem:[#allocation11 + $0x120] sm:$0xff]
    %v1326 = vld [vmem:[#allocation11 + $0x128] sm:$0xff]
    %v1327 = vld [vmem:[#allocation11 + $0x130] sm:$0xff]
    %v1328 = vld [vmem:[#allocation11 + $0x138] sm:$0xff]
    %v1329 = vld [vmem:[#allocation11 + $0x140] sm:$0xff]
    %v1330 = vld [vmem:[#allocation11 + $0x148] sm:$0xff]
    %v1331 = vld [vmem:[#allocation11 + $0x150] sm:$0xff]
    %v1332 = vld [vmem:[#allocation11 + $0x158] sm:$0xff]
    %v1333 = vld [vmem:[#allocation11 + $0x160] sm:$0xff]
    %v1334 = vld [vmem:[#allocation11 + $0x168] sm:$0xff]
    %v1335 = vld [vmem:[#allocation11 + $0x170] sm:$0xff]
    %v1336 = vld [vmem:[#allocation11 + $0x178] sm:$0xff]
    %v1337 = vld [vmem:[#allocation11 + $0x180] sm:$0xff]
    %v1338 = vld [vmem:[#allocation11 + $0x188] sm:$0xff]
    %v1339 = vld [vmem:[#allocation11 + $0x190] sm:$0xff]
    %v1340 = vld [vmem:[#allocation11 + $0x198] sm:$0xff]
    %v1341 = vld [vmem:[#allocation11 + $0x1a0] sm:$0xff]
    %v1342 = vld [vmem:[#allocation11 + $0x1a8] sm:$0xff]
    %v1343 = vld [vmem:[#allocation11 + $0x1b0] sm:$0xff]
    %v1344 = vld [vmem:[#allocation11 + $0x1b8] sm:$0xff]
    %v1345 = vld [vmem:[#allocation11 + $0x1c0] sm:$0xff]
    %v1346 = vld [vmem:[#allocation11 + $0x1c8] sm:$0xff]
    %v1347 = vld [vmem:[#allocation11 + $0x1d0] sm:$0xff]
    %v1348 = vld [vmem:[#allocation11 + $0x1d8] sm:$0xff]
    %v1349 = vld [vmem:[#allocation11 + $0x1e0] sm:$0xff]
    %v1350 = vld [vmem:[#allocation11 + $0x1e8] sm:$0xff]
    %v1351 = vld [vmem:[#allocation11 + $0x1f0] sm:$0xff]
    %v1352 = vld [vmem:[#allocation11 + $0x1f8] sm:$0xff]
    %v1353 = vld [vmem:[#allocation11 + $0x200] sm:$0xff]
    %v1354 = vld [vmem:[#allocation11 + $0x208] sm:$0xff]
    %v1355 = vld [vmem:[#allocation11 + $0x210] sm:$0xff]
    %v1356 = vld [vmem:[#allocation11 + $0x218] sm:$0xff]
    %v1357 = vld [vmem:[#allocation11 + $0x220] sm:$0xff]
    %v1358 = vld [vmem:[#allocation11 + $0x228] sm:$0xff]
    %v1359 = vld [vmem:[#allocation11 + $0x230] sm:$0xff]
    %v1360 = vld [vmem:[#allocation11 + $0x238] sm:$0xff]
    %v1361 = vld [vmem:[#allocation11 + $0x240] sm:$0xff]
    %v1362 = vld [vmem:[#allocation11 + $0x248] sm:$0xff]
    %v1363 = vld [vmem:[#allocation11 + $0x250] sm:$0xff]
    %v1364 = vld [vmem:[#allocation11 + $0x258] sm:$0xff]
    %v1365 = vld [vmem:[#allocation11 + $0x260] sm:$0xff]
    %v1366 = vld [vmem:[#allocation11 + $0x268] sm:$0xff]
    %v1367 = vld [vmem:[#allocation11 + $0x270] sm:$0xff]
    %v1368 = vld [vmem:[#allocation11 + $0x278] sm:$0xff]
    %v1369 = vld [vmem:[#allocation11 + $0x280] sm:$0xff]
    %v1370 = vld [vmem:[#allocation11 + $0x288] sm:$0xff]
    %v1371 = vld [vmem:[#allocation11 + $0x290] sm:$0xff]
    %v1372 = vld [vmem:[#allocation11 + $0x298] sm:$0xff]
    %v1373 = vld [vmem:[#allocation11 + $0x2a0] sm:$0xff]
    %v1374 = vld [vmem:[#allocation11 + $0x2a8] sm:$0xff]
    %v1375 = vld [vmem:[#allocation11 + $0x2b0] sm:$0xff]
    %v1376 = vld [vmem:[#allocation11 + $0x2b8] sm:$0xff]
    %v1377 = vld [vmem:[#allocation11 + $0x2c0] sm:$0xff]
    %v1378 = vld [vmem:[#allocation11 + $0x2c8] sm:$0xff]
    %v1379 = vld [vmem:[#allocation11 + $0x2d0] sm:$0xff]
    %v1380 = vld [vmem:[#allocation11 + $0x2d8] sm:$0xff]
    %v1381 = vld [vmem:[#allocation11 + $0x2e0] sm:$0xff]
    %v1382 = vld [vmem:[#allocation11 + $0x2e8] sm:$0xff]
    %v1383 = vld [vmem:[#allocation11 + $0x2f0] sm:$0xff]
    %v1384 = vld [vmem:[#allocation11 + $0x2f8] sm:$0xff]
    %v1385 = vld [vmem:[%s12] sm:$0x1]
    %v1387 = vlaneseq
    %v1388 = vshrl.u32 %v1387, 7
    %v1389 = vsub.s32 0, %v1388
    %v1390 = vrot.slane %v1385, %v1389
    %1392 = vmatprep.subr.mxu0 0.0
    %1393 = vmatpush1.msra.mxu0 %v1289
    %1394 = vmatprep.subr.mxu0 0.0
    %1395 = vmatpush1.msra.mxu0 %v1290
    %1396 = vmatprep.subr.mxu0 0.0
    %1397 = vmatpush1.msra.mxu0 %v1291
    %1398 = vmatprep.subr.mxu0 0.0
    %1399 = vmatpush1.msra.mxu0 %v1292
    %1400 = vmatprep.subr.mxu0 0.0
    %1401 = vmatpush1.msra.mxu0 %v1293
    %1402 = vmatprep.subr.mxu0 0.0
    %1403 = vmatpush1.msra.mxu0 %v1294
    %1404 = vmatprep.subr.mxu0 0.0
    %1405 = vmatpush1.msra.mxu0 %v1295
    %1406 = vmatprep.subr.mxu0 0.0
    %1407 = vmatpush1.msra.mxu0 %v1296
    %1408 = vmatprep.subr.mxu0 0.0
    %1409 = vmatpush1.msra.mxu0 %v1297
    %1410 = vmatprep.subr.mxu0 0.0
    %1411 = vmatpush1.msra.mxu0 %v1298
    %1412 = vmatprep.subr.mxu0 0.0
    %1413 = vmatpush1.msra.mxu0 %v1299
    %1414 = vmatprep.subr.mxu0 0.0
    %1415 = vmatpush1.msra.mxu0 %v1300
    %1416 = vmatprep.subr.mxu0 0.0
    %1417 = vmatpush1.msra.mxu0 %v1301
    %1418 = vmatprep.subr.mxu0 0.0
    %1419 = vmatpush1.msra.mxu0 %v1302
    %1420 = vmatprep.subr.mxu0 0.0
    %1421 = vmatpush1.msra.mxu0 %v1303
    %1422 = vmatprep.subr.mxu0 0.0
    %1423 = vmatpush1.msra.mxu0 %v1304
    %1424 = vmatprep.subr.mxu0 0.0
    %1425 = vmatpush1.msra.mxu0 %v1305
    %1426 = vmatprep.subr.mxu0 0.0
    %1427 = vmatpush1.msra.mxu0 %v1306
    %1428 = vmatprep.subr.mxu0 0.0
    %1429 = vmatpush1.msra.mxu0 %v1307
    %1430 = vmatprep.subr.mxu0 0.0
    %1431 = vmatpush1.msra.mxu0 %v1308
    %1432 = vmatprep.subr.mxu0 0.0
    %1433 = vmatpush1.msra.mxu0 %v1309
    %1434 = vmatprep.subr.mxu0 0.0
    %1435 = vmatpush1.msra.mxu0 %v1310
    %1436 = vmatprep.subr.mxu0 0.0
    %1437 = vmatpush1.msra.mxu0 %v1311
    %1438 = vmatprep.subr.mxu0 0.0
    %1439 = vmatpush1.msra.mxu0 %v1312
    %1440 = vmatprep.subr.mxu0 0.0
    %1441 = vmatpush1.msra.mxu0 %v1313
    %1442 = vmatprep.subr.mxu0 0.0
    %1443 = vmatpush1.msra.mxu0 %v1314
    %1444 = vmatprep.subr.mxu0 0.0
    %1445 = vmatpush1.msra.mxu0 %v1315
    %1446 = vmatprep.subr.mxu0 0.0
    %1447 = vmatpush1.msra.mxu0 %v1316
    %1448 = vmatprep.subr.mxu0 0.0
    %1449 = vmatpush1.msra.mxu0 %v1317
    %1450 = vmatprep.subr.mxu0 0.0
    %1451 = vmatpush1.msra.mxu0 %v1318
    %1452 = vmatprep.subr.mxu0 0.0
    %1453 = vmatpush1.msra.mxu0 %v1319
    %1454 = vmatprep.subr.mxu0 0.0
    %1455 = vmatpush1.msra.mxu0 %v1320
    %1456 = vmatprep.mubr.f32.mxu0 %v1274
    %1457 = vmatmul.mubr.f32.gmra.mrb[0].mxu0 %v1270
    %v1458 = vpop.f32.mrb[0].mxu0
    %v1459 = vadd.f32 %v1390, %v1458
    %v1460 = vpop.f32.mrb[0].mxu0
    %1461 = vdwg.mxu0
    %1462 = vmatprep.subr.mxu0 0.0
    %1463 = vmatpush1.msra.mxu0 %v1321
    %1464 = vmatprep.subr.mxu0 0.0
    %1465 = vmatpush1.msra.mxu0 %v1322
    %1466 = vmatprep.subr.mxu0 0.0
    %1467 = vmatpush1.msra.mxu0 %v1323
    %1468 = vmatprep.subr.mxu0 0.0
    %1469 = vmatpush1.msra.mxu0 %v1324
    %1470 = vmatprep.subr.mxu0 0.0
    %1471 = vmatpush1.msra.mxu0 %v1325
    %1472 = vmatprep.subr.mxu0 0.0
    %1473 = vmatpush1.msra.mxu0 %v1326
    %1474 = vmatprep.subr.mxu0 0.0
    %1475 = vmatpush1.msra.mxu0 %v1327
    %1476 = vmatprep.subr.mxu0 0.0
    %1477 = vmatpush1.msra.mxu0 %v1328
    %1478 = vmatprep.subr.mxu0 0.0
    %1479 = vmatpush1.msra.mxu0 %v1329
    %1480 = vmatprep.subr.mxu0 0.0
    %1481 = vmatpush1.msra.mxu0 %v1330
    %1482 = vmatprep.subr.mxu0 0.0
    %1483 = vmatpush1.msra.mxu0 %v1331
    %1484 = vmatprep.subr.mxu0 0.0
    %1485 = vmatpush1.msra.mxu0 %v1332
    %1486 = vmatprep.subr.mxu0 0.0
    %1487 = vmatpush1.msra.mxu0 %v1333
    %1488 = vmatprep.subr.mxu0 0.0
    %1489 = vmatpush1.msra.mxu0 %v1334
    %1490 = vmatprep.subr.mxu0 0.0
    %1491 = vmatpush1.msra.mxu0 %v1335
    %1492 = vmatprep.subr.mxu0 0.0
    %1493 = vmatpush1.msra.mxu0 %v1336
    %1494 = vmatprep.subr.mxu0 0.0
    %1495 = vmatpush1.msra.mxu0 %v1337
    %1496 = vmatprep.subr.mxu0 0.0
    %1497 = vmatpush1.msra.mxu0 %v1338
    %1498 = vmatprep.subr.mxu0 0.0
    %1499 = vmatpush1.msra.mxu0 %v1339
    %1500 = vmatprep.subr.mxu0 0.0
    %1501 = vmatpush1.msra.mxu0 %v1340
    %1502 = vmatprep.subr.mxu0 0.0
    %1503 = vmatpush1.msra.mxu0 %v1341
    %1504 = vmatprep.subr.mxu0 0.0
    %1505 = vmatpush1.msra.mxu0 %v1342
    %1506 = vmatprep.subr.mxu0 0.0
    %1507 = vmatpush1.msra.mxu0 %v1343
    %1508 = vmatprep.subr.mxu0 0.0
    %1509 = vmatpush1.msra.mxu0 %v1344
    %1510 = vmatprep.subr.mxu0 0.0
    %1511 = vmatpush1.msra.mxu0 %v1345
    %1512 = vmatprep.subr.mxu0 0.0
    %1513 = vmatpush1.msra.mxu0 %v1346
    %1514 = vmatprep.subr.mxu0 0.0
    %1515 = vmatpush1.msra.mxu0 %v1347
    %1516 = vmatprep.subr.mxu0 0.0
    %1517 = vmatpush1.msra.mxu0 %v1348
    %1518 = vmatprep.subr.mxu0 0.0
    %1519 = vmatpush1.msra.mxu0 %v1349
    %1520 = vmatprep.subr.mxu0 0.0
    %1521 = vmatpush1.msra.mxu0 %v1350
    %1522 = vmatprep.subr.mxu0 0.0
    %1523 = vmatpush1.msra.mxu0 %v1351
    %1524 = vmatprep.subr.mxu0 0.0
    %1525 = vmatpush1.msra.mxu0 %v1352
    %1526 = vmatprep.mubr.f32.mxu0 %v1281
    %1527 = vmatmul.mubr.f32.gmra.mrb[0].mxu0 %v1278
    %v1528 = vpop.f32.mrb[0].mxu0
    %v1529 = vadd.f32 %v1459, %v1528
    %v1530 = vpop.f32.mrb[0].mxu0
    %1531 = vdwg.mxu0
    %1532 = vmatprep.subr.mxu0 0.0
    %1533 = vmatpush1.msra.mxu0 %v1353
    %1534 = vmatprep.subr.mxu0 0.0
    %1535 = vmatpush1.msra.mxu0 %v1354
    %1536 = vmatprep.subr.mxu0 0.0
    %1537 = vmatpush1.msra.mxu0 %v1355
    %1538 = vmatprep.subr.mxu0 0.0
    %1539 = vmatpush1.msra.mxu0 %v1356
    %1540 = vmatprep.subr.mxu0 0.0
    %1541 = vmatpush1.msra.mxu0 %v1357
    %1542 = vmatprep.subr.mxu0 0.0
    %1543 = vmatpush1.msra.mxu0 %v1358
    %1544 = vmatprep.subr.mxu0 0.0
    %1545 = vmatpush1.msra.mxu0 %v1359
    %1546 = vmatprep.subr.mxu0 0.0
    %1547 = vmatpush1.msra.mxu0 %v1360
    %1548 = vmatprep.subr.mxu0 0.0
    %1549 = vmatpush1.msra.mxu0 %v1361
    %1550 = vmatprep.subr.mxu0 0.0
    %1551 = vmatpush1.msra.mxu0 %v1362
    %1552 = vmatprep.subr.mxu0 0.0
    %1553 = vmatpush1.msra.mxu0 %v1363
    %1554 = vmatprep.subr.mxu0 0.0
    %1555 = vmatpush1.msra.mxu0 %v1364
    %1556 = vmatprep.subr.mxu0 0.0
    %1557 = vmatpush1.msra.mxu0 %v1365
    %1558 = vmatprep.subr.mxu0 0.0
    %1559 = vmatpush1.msra.mxu0 %v1366
    %1560 = vmatprep.subr.mxu0 0.0
    %1561 = vmatpush1.msra.mxu0 %v1367
    %1562 = vmatprep.subr.mxu0 0.0
    %1563 = vmatpush1.msra.mxu0 %v1368
    %1564 = vmatprep.subr.mxu0 0.0
    %1565 = vmatpush1.msra.mxu0 %v1369
    %1566 = vmatprep.subr.mxu0 0.0
    %1567 = vmatpush1.msra.mxu0 %v1370
    %1568 = vmatprep.subr.mxu0 0.0
    %1569 = vmatpush1.msra.mxu0 %v1371
    %1570 = vmatprep.subr.mxu0 0.0
    %1571 = vmatpush1.msra.mxu0 %v1372
    %1572 = vmatprep.subr.mxu0 0.0
    %1573 = vmatpush1.msra.mxu0 %v1373
    %1574 = vmatprep.subr.mxu0 0.0
    %1575 = vmatpush1.msra.mxu0 %v1374
    %1576 = vmatprep.subr.mxu0 0.0
    %1577 = vmatpush1.msra.mxu0 %v1375
    %1578 = vmatprep.subr.mxu0 0.0
    %1579 = vmatpush1.msra.mxu0 %v1376
    %1580 = vmatprep.subr.mxu0 0.0
    %1581 = vmatpush1.msra.mxu0 %v1377
    %1582 = vmatprep.subr.mxu0 0.0
    %1583 = vmatpush1.msra.mxu0 %v1378
    %1584 = vmatprep.subr.mxu0 0.0
    %1585 = vmatpush1.msra.mxu0 %v1379
    %1586 = vmatprep.subr.mxu0 0.0
    %1587 = vmatpush1.msra.mxu0 %v1380
    %1588 = vmatprep.subr.mxu0 0.0
    %1589 = vmatpush1.msra.mxu0 %v1381
    %1590 = vmatprep.subr.mxu0 0.0
    %1591 = vmatpush1.msra.mxu0 %v1382
    %1592 = vmatprep.subr.mxu0 0.0
    %1593 = vmatpush1.msra.mxu0 %v1383
    %1594 = vmatprep.subr.mxu0 0.0
    %1595 = vmatpush1.msra.mxu0 %v1384
    %1596 = vmatprep.mubr.f32.mxu0 %v1288
    %1597 = vmatmul.mubr.f32.gmra.mrb[0].mxu0 %v1285
    %v1598 = vpop.f32.mrb[0].mxu0
    %v1599 = vadd.f32 %v1529, %v1598
    %v1600 = vpop.f32.mrb[0].mxu0
    %1601 = vdwg.mxu0
    %1602 = vst [vmem:[#allocation13] sm:$0x3] %v1599
    // Predicated region
    $region78: #{classifier1d_forward.1} parent=1 // pred_check
      _
    $region79: #{classifier1d_forward.1} parent=1 // pred_check_branch
      %1604 = sbr.rel (0) target = $region81
    $region80: #{classifier1d_forward.1} parent=1 // pred_region
      %s1606 = ssub.s32 32, 32
      %1607 = vsyncadd [#allocation4], %s1606
      %s1609 = sshll.u32 [#allocation13], 4
      %s1610 = int_to_ptr.vmem [resolvable:$true] %s1609
      %1612 = dma.vmem_to_hbm [thread:$0]  %s1610, 32, %s13, [#allocation4]
    $region81: #{classifier1d_forward.1} parent=1 // pred_fallthru
      _
    // Predicated region
    $region82: #{classifier1d_forward.1} parent=1 // pred_check
      _
    $region83: #{classifier1d_forward.1} parent=1 // pred_check_branch
      %1614 = sbr.rel (0) target = $region85
    $region84: #{classifier1d_forward.1} parent=1 // pred_region
      %1615 = dma.done [#allocation4], 32
    $region85: #{classifier1d_forward.1} parent=1 // pred_fallthru
      _
    %1616 = vsyncpa [#allocation3], 1
    %1617 = vsyncpa [#allocation6], 1
    %1618 = vsyncpa [#allocation9], 1
    %1619 = vsyncpa [#allocation12], 1
    %1620 = vsyncpa [#allocation4], 1

</llo_original>
